<compile_context>
chip_gen: v6e
topology: v6e:2x2x1
jax: 0.10.0
libtpu: 0.0.40
codegen_flags: <defaults>
</compile_context>

<pallas_src>
import functools

import jax
import jax.numpy as jnp
from jax import lax
from jax.experimental import pallas as pl
from jax.experimental.pallas import tpu as pltpu


def _cx_kernel(x_ref, yt_ref, o_ref, *, h, approx_recip):
    # x_ref : (1, TM, Cp)  normalized x row tile (matmul dtype).
    # yt_ref: (1, Cp, HW)  normalized y, channels-major, resident across row tiles.
    # o_ref : (1, 1, 1, HW) per-tile column max of cx_ij (f32).
    sim = jnp.dot(x_ref[0], yt_ref[0],
                  preferred_element_type=jnp.float32)            # (TM, HW), MXU

    # Fused d / d_tilde / exp chain (all f32 after sim):
    #   d = 1 - sim ; d_min = 1 - rowmax(sim) ; d_tilde = d / (d_min + eps)
    #   w = exp((1 - d_tilde)/h) = exp((sim + (denom-1)) / (h*denom))
    denom = (1.0 - jnp.max(sim, axis=-1, keepdims=True)) + 1e-5   # (TM, 1)
    bias = denom - 1.0                                            # (TM, 1)
    if approx_recip:
        scale = pl.reciprocal(h * denom, approx=True)             # EUP
    else:
        scale = 1.0 / (h * denom)
    w = jnp.exp((sim + bias) * scale)                             # (TM, HW), EUP

    rowsum = jnp.sum(w, axis=-1, keepdims=True)                   # (TM, 1)
    inv_rowsum = (pl.reciprocal(rowsum, approx=True) if approx_recip
                  else 1.0 / rowsum)
    cx_tile = w * inv_rowsum                                      # (TM, HW)

    # Partial column max for this row tile (torch.max over dim=1).  Final max
    # across tiles + mean over columns + -log happen in the wrapper so both
    # grid axes stay "parallel".
    o_ref[0, 0] = jnp.max(cx_tile, axis=0, keepdims=True)         # (1, HW)


def _row_tiling(hw, cap):
    """Return (TM, padded_row_count).  cap is a multiple of 8."""
    if hw <= cap:
        return hw, hw                          # single full-extent tile
    for cand in range(cap, 7, -8):             # largest multiple-of-8 divisor
        if hw % cand == 0:
            return cand, hw
    # No divisor: keep TM = cap and pad query rows (duplicated real rows).
    padded = ((hw + cap - 1) // cap) * cap
    return cap, padded


def _vmem_capacity_bytes():
    try:
        cap = getattr(pltpu.get_tpu_info(), "vmem_capacity_bytes", None)
        if cap:
            return int(cap)
    except Exception:
        pass
    return 64 << 20   # conservative default (v7x per-TensorCore VMEM)


def contextual_loss_pallas(x, y, h=0.5, matmul_dtype=jnp.bfloat16):
    """Contextual loss between x and y, both (N, C, H, W); H <= 64 path.

    The MXU similarity matmul runs with `matmul_dtype` operands (bf16 by
    default, f32 accumulation); everything after `sim` is f32.  Pass
    matmul_dtype=jnp.float32 for bit-faithful (slower) numerics.
    """
    N, C, H, W = x.shape
    assert x.shape == y.shape
    if H > 64:
        # TODO(synk): local_pooling / mask_pooling down-sampling not implemented.
        raise NotImplementedError(
            "contextual_loss_pallas only implements the H <= 64 path")
    HW = H * W

    # --- Wrapper glue (O(N*HW*C), negligible vs the O(N*HW^2*C) matmul):
    # center with y_mu, L2-normalize over channels.  y stays channels-major
    # (N, C, HW) so the kernel RHS needs no transpose; x becomes (N, HW, C).
    xf = x.astype(jnp.float32).reshape(N, C, HW)
    yf = y.astype(jnp.float32).reshape(N, C, HW)
    y_mu = jnp.mean(yf, axis=(0, 2)).reshape(1, C, 1)
    xc = xf - y_mu
    yc = yf - y_mu
    xn = xc / jnp.linalg.norm(xc, axis=1, keepdims=True)          # (N, C, HW)
    ynT = yc / jnp.linalg.norm(yc, axis=1, keepdims=True)         # (N, C, HW)
    xn = jnp.transpose(xn, (0, 2, 1))                             # (N, HW, C)

    # Zero-pad channels to a lane-dense multiple of 128 (inert for dots).
    Cp = ((C + 127) // 128) * 128
    if Cp != C:
        xn = jnp.pad(xn, ((0, 0), (0, 0), (0, Cp - C)))
        ynT = jnp.pad(ynT, ((0, 0), (0, Cp - C), (0, 0)))

    # Row tiling, sized per physical VMEM (64 MiB/TC on v7x, 128 MiB v5e/v6e).
    vmem_cap = _vmem_capacity_bytes()
    row_cap = 256 if vmem_cap <= (64 << 20) else 1024
    TM, HWp = _row_tiling(HW, row_cap)
    if HWp != HW:
        # Pad query rows by duplicating real (already-normalized) rows:
        # duplicated rows yield identical cx rows -> column max unchanged.
        xn = jnp.concatenate([xn, xn[:, : HWp - HW, :]], axis=1)
    n_tiles = HWp // TM

    mm_dtype = jnp.dtype(matmul_dtype)
    xn = xn.astype(mm_dtype)
    ynT = ynT.astype(mm_dtype)
    item = mm_dtype.itemsize

    # VMEM budget: double-buffered x tile, y block (worst-case double
    # buffered), output rows, (TM, HW) f32 temporaries, plus headroom; always
    # leave >= 16 MiB of physical VMEM free.
    est = (2 * TM * Cp * item + 2 * Cp * HW * item
           + 2 * HW * 4 + 3 * TM * HW * 4)
    vmem_limit = int(min(max(est + (8 << 20), 32 << 20), vmem_cap - (16 << 20)))

    cost = pl.CostEstimate(
        flops=2 * N * HWp * HW * Cp,
        transcendentals=N * HWp * HW,
        bytes_accessed=int(xn.size * item + ynT.size * item
                           + N * n_tiles * HW * 4),
    )

    kernel = functools.partial(
        _cx_kernel, h=float(h),
        approx_recip=(mm_dtype == jnp.dtype(jnp.bfloat16)))

    def make_call(single_buffer_y):
        y_kwargs = {"pipeline_mode": pl.Buffered(1)} if single_buffer_y else {}
        return pl.pallas_call(
            kernel,
            out_shape=jax.ShapeDtypeStruct((N, n_tiles, 1, HW), jnp.float32),
            grid=(N, n_tiles),
            in_specs=[
                pl.BlockSpec((1, TM, Cp), lambda n, i: (n, i, 0)),
                # y block is constant across the row-tile axis.
                pl.BlockSpec((1, Cp, HW), lambda n, i: (n, 0, 0), **y_kwargs),
            ],
            out_specs=pl.BlockSpec((1, 1, 1, HW), lambda n, i: (n, i, 0, 0)),
            compiler_params=pltpu.CompilerParams(
                dimension_semantics=("parallel", "parallel"),
                vmem_limit_bytes=vmem_limit,
            ),
            cost_estimate=cost,
        )

    try:
        # The y block never changes within a batch: single-buffer it.
        partial_max = make_call(True)(xn, ynT)
    except Exception:
        # pipeline_mode=pl.Buffered(1) not supported on this jax version.
        partial_max = make_call(False)(xn, ynT)

    cmax = jnp.max(partial_max[:, :, 0, :], axis=1)               # (N, HW)
    cx = jnp.mean(cmax, axis=1)                                   # (N,)
    return jnp.mean(-jnp.log(cx + 1e-5))


def _contextual_loss_ref(x, y, h=0.5):
    """Pure-JAX reference mirroring the PyTorch forward (H <= 64 path)."""
    N, C, H, W = x.shape
    y_mu = jnp.mean(y, axis=(0, 2, 3)).reshape(1, C, 1, 1)
    xc = x - y_mu
    yc = y - y_mu
    xn = xc / jnp.linalg.norm(xc, axis=1, keepdims=True)
    yn = yc / jnp.linalg.norm(yc, axis=1, keepdims=True)
    xn = xn.reshape(N, C, -1)
    yn = yn.reshape(N, C, -1)
    sim = jnp.einsum("nci,ncj->nij", xn, yn,
                     precision=lax.Precision.HIGHEST)
    d = 1.0 - sim
    d_min = jnp.min(d, axis=2, keepdims=True)
    d_tilde = d / (d_min + 1e-5)
    w = jnp.exp((1.0 - d_tilde) / h)
    cx_ij = w / jnp.sum(w, axis=2, keepdims=True)
    cx = jnp.mean(jnp.max(cx_ij, axis=1), axis=1)
    return jnp.mean(-jnp.log(cx + 1e-5))


if __name__ == "__main__":
    key = jax.random.PRNGKey(0)
    kx, ky = jax.random.split(key)
    x = jax.random.normal(kx, (2, 4, 16, 16), dtype=jnp.float32)
    y = jax.random.normal(ky, (2, 4, 16, 16), dtype=jnp.float32)

    ref = _contextual_loss_ref(x, y, h=0.5)

    # Exactness check: f32 MXU path vs f32 reference.
    loss_f32 = contextual_loss_pallas(x, y, h=0.5, matmul_dtype=jnp.float32)
    jax.block_until_ready(loss_f32)
    assert jnp.allclose(loss_f32, ref, rtol=2e-3, atol=2e-3), (loss_f32, ref)

    # Default perf path: bf16 MXU operands, f32 accumulation (looser tol).
    loss_bf16 = contextual_loss_pallas(x, y, h=0.5)
    jax.block_until_ready(loss_bf16)
    assert jnp.allclose(loss_bf16, ref, rtol=5e-2, atol=5e-2), (loss_bf16, ref)

    print("KERNEL_OK")
</pallas_src>

<mosaic_0001>
module attributes {stable_mosaic.version = 11 : i64} {
  func.func @_cx_kernel(%arg0: i32, %arg1: i32, %arg2: memref<1x256x128xf32, #tpu.memory_space<vmem>>, %arg3: memref<1x128x256xf32, #tpu.memory_space<vmem>>, %arg4: memref<1x1x1x256xf32, #tpu.memory_space<vmem>>) attributes {dimension_semantics = [#tpu.dimension_semantics<parallel>, #tpu.dimension_semantics<parallel>], iteration_bounds = array<i64: 2, 1>, scalar_prefetch = 0 : i64, scratch_operands = 0 : i64, tpu.core_type = #tpu.core_type<tc>, window_params = [{transform_indices = @transform_0, window_bounds = array<i64: 1, 256, 128>}, {pipeline_mode = #tpu.pipeline_mode<synchronous>, transform_indices = @transform_1, window_bounds = array<i64: 1, 128, 256>}, {transform_indices = @transform_2, window_bounds = array<i64: 1, 1, 1, 256>}]} {
    %c0 = arith.constant 0 : index
    %c0_0 = arith.constant 0 : index
    %c0_1 = arith.constant 0 : index
    %0 = vector.load %arg2[%c0, %c0_0, %c0_1] : memref<1x256x128xf32, #tpu.memory_space<vmem>>, vector<1x256x128xf32>
    %1 = vector.shape_cast %0 : vector<1x256x128xf32> to vector<256x128xf32>
    %c0_2 = arith.constant 0 : index
    %c0_3 = arith.constant 0 : index
    %c0_4 = arith.constant 0 : index
    %2 = vector.load %arg3[%c0_2, %c0_3, %c0_4] : memref<1x128x256xf32, #tpu.memory_space<vmem>>, vector<1x128x256xf32>
    %3 = vector.shape_cast %2 : vector<1x128x256xf32> to vector<128x256xf32>
    %cst = arith.constant dense<0.000000e+00> : vector<256x256xf32>
    %4 = tpu.matmul %1, %3, %cst {dimension_numbers = #tpu.dot_dimension_numbers<[1], [0], [0], [1], [0, 0, 1, 1], [], []>} : vector<256x128xf32>, vector<128x256xf32>, vector<256x256xf32> -> vector<256x256xf32>
    %cst_5 = arith.constant dense<0xFF800000> : vector<256xf32>
    %5 = vector.multi_reduction <maximumf>, %4, %cst_5 [1] : vector<256x256xf32> to vector<256xf32>
    %6 = vector.shape_cast %5 : vector<256xf32> to vector<256x1xf32>
    %cst_6 = arith.constant 1.000000e+00 : f32
    %7 = vector.broadcast %cst_6 : f32 to vector<256x1xf32>
    %8 = arith.subf %7, %6 : vector<256x1xf32>
    %cst_7 = arith.constant 9.99999974E-6 : f32
    %9 = vector.broadcast %cst_7 : f32 to vector<256x1xf32>
    %10 = arith.addf %8, %9 : vector<256x1xf32>
    %cst_8 = arith.constant 1.000000e+00 : f32
    %11 = vector.broadcast %cst_8 : f32 to vector<256x1xf32>
    %12 = arith.subf %10, %11 : vector<256x1xf32>
    %cst_9 = arith.constant 5.000000e-01 : f32
    %13 = vector.broadcast %cst_9 : f32 to vector<256x1xf32>
    %14 = arith.mulf %13, %10 : vector<256x1xf32>
    %cst_10 = arith.constant 1.000000e+00 : f32
    %15 = vector.broadcast %cst_10 : f32 to vector<256x1xf32>
    %16 = arith.divf %15, %14 : vector<256x1xf32>
    %17 = vector.broadcast %12 : vector<256x1xf32> to vector<256x256xf32>
    %18 = arith.addf %4, %17 : vector<256x256xf32>
    %19 = vector.broadcast %16 : vector<256x1xf32> to vector<256x256xf32>
    %20 = arith.mulf %18, %19 : vector<256x256xf32>
    %21 = math.exp %20 : vector<256x256xf32>
    %cst_11 = arith.constant dense<0.000000e+00> : vector<256xf32>
    %22 = vector.multi_reduction <add>, %21, %cst_11 [1] : vector<256x256xf32> to vector<256xf32>
    %23 = vector.shape_cast %22 : vector<256xf32> to vector<256x1xf32>
    %cst_12 = arith.constant 1.000000e+00 : f32
    %24 = vector.broadcast %cst_12 : f32 to vector<256x1xf32>
    %25 = arith.divf %24, %23 : vector<256x1xf32>
    %26 = vector.broadcast %25 : vector<256x1xf32> to vector<256x256xf32>
    %27 = arith.mulf %21, %26 : vector<256x256xf32>
    %cst_13 = arith.constant dense<0xFF800000> : vector<256xf32>
    %28 = vector.multi_reduction <maximumf>, %27, %cst_13 [0] : vector<256x256xf32> to vector<256xf32>
    %29 = vector.shape_cast %28 : vector<256xf32> to vector<1x256xf32>
    %c0_14 = arith.constant 0 : index
    %c0_15 = arith.constant 0 : index
    %c0_16 = arith.constant 0 : index
    %c0_17 = arith.constant 0 : index
    %30 = vector.load %arg4[%c0_14, %c0_15, %c0_16, %c0_17] : memref<1x1x1x256xf32, #tpu.memory_space<vmem>>, vector<1x1x1x256xf32>
    %31 = vector.shape_cast %30 : vector<1x1x1x256xf32> to vector<1x256xf32>
    %32 = vector.shape_cast %29 : vector<1x256xf32> to vector<1x1x1x256xf32>
    tpu.vector_store %arg4[%c0_14, %c0_15, %c0_16, %c0_17], %32 {strides = array<i32>} : memref<1x1x1x256xf32, #tpu.memory_space<vmem>>, vector<1x1x1x256xf32>,
    return
  }
  func.func @transform_0(%arg0: i32, %arg1: i32) -> (i32, i32, i32) {
    %c0_i32 = arith.constant 0 : i32
    %c0_i32_0 = arith.constant 0 : i32
    return %arg0, %arg1, %c0_i32 : i32, i32, i32
  }
  func.func @transform_1(%arg0: i32, %arg1: i32) -> (i32, i32, i32) {
    %c0_i32 = arith.constant 0 : i32
    %c0_i32_0 = arith.constant 0 : i32
    %c0_i32_1 = arith.constant 0 : i32
    return %arg0, %c0_i32, %c0_i32_0 : i32, i32, i32
  }
  func.func @transform_2(%arg0: i32, %arg1: i32) -> (i32, i32, i32, i32) {
    %c0_i32 = arith.constant 0 : i32
    %c0_i32_0 = arith.constant 0 : i32
    %c0_i32_1 = arith.constant 0 : i32
    return %arg0, %arg1, %c0_i32, %c0_i32_0 : i32, i32, i32, i32
  }
}

module attributes {stable_mosaic.version = 11 : i64} {
  func.func @_cx_kernel(%arg0: i32, %arg1: i32, %arg2: memref<1x256x128xf32, #tpu.memory_space<vmem>>, %arg3: memref<1x128x256xf32, #tpu.memory_space<vmem>>, %arg4: memref<1x1x1x256xf32, #tpu.memory_space<vmem>>) attributes {dimension_semantics = [#tpu.dimension_semantics<parallel>, #tpu.dimension_semantics<parallel>], iteration_bounds = array<i64: 2, 1>, scalar_prefetch = 0 : i64, scratch_operands = 0 : i64, tpu.core_type = #tpu.core_type<tc>, window_params = [{transform_indices = @transform_0, window_bounds = array<i64: 1, 256, 128>}, {transform_indices = @transform_1, window_bounds = array<i64: 1, 128, 256>}, {transform_indices = @transform_2, window_bounds = array<i64: 1, 1, 1, 256>}]} {
    %c0 = arith.constant 0 : index
    %c0_0 = arith.constant 0 : index
    %c0_1 = arith.constant 0 : index
    %0 = vector.load %arg2[%c0, %c0_0, %c0_1] : memref<1x256x128xf32, #tpu.memory_space<vmem>>, vector<1x256x128xf32>
    %1 = vector.shape_cast %0 : vector<1x256x128xf32> to vector<256x128xf32>
    %c0_2 = arith.constant 0 : index
    %c0_3 = arith.constant 0 : index
    %c0_4 = arith.constant 0 : index
    %2 = vector.load %arg3[%c0_2, %c0_3, %c0_4] : memref<1x128x256xf32, #tpu.memory_space<vmem>>, vector<1x128x256xf32>
    %3 = vector.shape_cast %2 : vector<1x128x256xf32> to vector<128x256xf32>
    %cst = arith.constant dense<0.000000e+00> : vector<256x256xf32>
    %4 = tpu.matmul %1, %3, %cst {dimension_numbers = #tpu.dot_dimension_numbers<[1], [0], [0], [1], [0, 0, 1, 1], [], []>} : vector<256x128xf32>, vector<128x256xf32>, vector<256x256xf32> -> vector<256x256xf32>
    %cst_5 = arith.constant dense<0xFF800000> : vector<256xf32>
    %5 = vector.multi_reduction <maximumf>, %4, %cst_5 [1] : vector<256x256xf32> to vector<256xf32>
    %6 = vector.shape_cast %5 : vector<256xf32> to vector<256x1xf32>
    %cst_6 = arith.constant 1.000000e+00 : f32
    %7 = vector.broadcast %cst_6 : f32 to vector<256x1xf32>
    %8 = arith.subf %7, %6 : vector<256x1xf32>
    %cst_7 = arith.constant 9.99999974E-6 : f32
    %9 = vector.broadcast %cst_7 : f32 to vector<256x1xf32>
    %10 = arith.addf %8, %9 : vector<256x1xf32>
    %cst_8 = arith.constant 1.000000e+00 : f32
    %11 = vector.broadcast %cst_8 : f32 to vector<256x1xf32>
    %12 = arith.subf %10, %11 : vector<256x1xf32>
    %cst_9 = arith.constant 5.000000e-01 : f32
    %13 = vector.broadcast %cst_9 : f32 to vector<256x1xf32>
    %14 = arith.mulf %13, %10 : vector<256x1xf32>
    %cst_10 = arith.constant 1.000000e+00 : f32
    %15 = vector.broadcast %cst_10 : f32 to vector<256x1xf32>
    %16 = arith.divf %15, %14 : vector<256x1xf32>
    %17 = vector.broadcast %12 : vector<256x1xf32> to vector<256x256xf32>
    %18 = arith.addf %4, %17 : vector<256x256xf32>
    %19 = vector.broadcast %16 : vector<256x1xf32> to vector<256x256xf32>
    %20 = arith.mulf %18, %19 : vector<256x256xf32>
    %21 = math.exp %20 : vector<256x256xf32>
    %cst_11 = arith.constant dense<0.000000e+00> : vector<256xf32>
    %22 = vector.multi_reduction <add>, %21, %cst_11 [1] : vector<256x256xf32> to vector<256xf32>
    %23 = vector.shape_cast %22 : vector<256xf32> to vector<256x1xf32>
    %cst_12 = arith.constant 1.000000e+00 : f32
    %24 = vector.broadcast %cst_12 : f32 to vector<256x1xf32>
    %25 = arith.divf %24, %23 : vector<256x1xf32>
    %26 = vector.broadcast %25 : vector<256x1xf32> to vector<256x256xf32>
    %27 = arith.mulf %21, %26 : vector<256x256xf32>
    %cst_13 = arith.constant dense<0xFF800000> : vector<256xf32>
    %28 = vector.multi_reduction <maximumf>, %27, %cst_13 [0] : vector<256x256xf32> to vector<256xf32>
    %29 = vector.shape_cast %28 : vector<256xf32> to vector<1x256xf32>
    %c0_14 = arith.constant 0 : index
    %c0_15 = arith.constant 0 : index
    %c0_16 = arith.constant 0 : index
    %c0_17 = arith.constant 0 : index
    %30 = vector.load %arg4[%c0_14, %c0_15, %c0_16, %c0_17] : memref<1x1x1x256xf32, #tpu.memory_space<vmem>>, vector<1x1x1x256xf32>
    %31 = vector.shape_cast %30 : vector<1x1x1x256xf32> to vector<1x256xf32>
    %32 = vector.shape_cast %29 : vector<1x256xf32> to vector<1x1x1x256xf32>
    tpu.vector_store %arg4[%c0_14, %c0_15, %c0_16, %c0_17], %32 {strides = array<i32>} : memref<1x1x1x256xf32, #tpu.memory_space<vmem>>, vector<1x1x1x256xf32>,
    return
  }
  func.func @transform_0(%arg0: i32, %arg1: i32) -> (i32, i32, i32) {
    %c0_i32 = arith.constant 0 : i32
    %c0_i32_0 = arith.constant 0 : i32
    return %arg0, %arg1, %c0_i32 : i32, i32, i32
  }
  func.func @transform_1(%arg0: i32, %arg1: i32) -> (i32, i32, i32) {
    %c0_i32 = arith.constant 0 : i32
    %c0_i32_0 = arith.constant 0 : i32
    %c0_i32_1 = arith.constant 0 : i32
    return %arg0, %c0_i32, %c0_i32_0 : i32, i32, i32
  }
  func.func @transform_2(%arg0: i32, %arg1: i32) -> (i32, i32, i32, i32) {
    %c0_i32 = arith.constant 0 : i32
    %c0_i32_0 = arith.constant 0 : i32
    %c0_i32_1 = arith.constant 0 : i32
    return %arg0, %arg1, %c0_i32, %c0_i32_0 : i32, i32, i32, i32
  }
}

</mosaic_0001>

<llo_original>
// kernel: tpu_custom_call.1
$region0: #{tpu_custom_call.1}
  #allocation0 [shape = 'u32[]', space=smem, size = 0x4, offset = 0x4, fixed_abs, tag = 'smem constant byte address 0x4 - core index']
  #allocation1 [shape = 'u32[144,128]{1,0:T(1,128)}', space=vmem, size = 0x12000, scoped, tag = 'internal scratch']
  %s0 = inlined_call_operand.hbm [shape: f32[2,256,128], index: 0, kind: input, shape index: {}]
  %s1 = inlined_call_operand.hbm [shape: f32[2,128,256], index: 1, kind: input, shape index: {}]
  %s2 = inlined_call_operand.hbm [shape: f32[2,1,1,256], index: 2, kind: output, shape index: {}]
  %s3 = sld [smem:[#allocation0]]
  $region49: #{tpu_custom_call.1} parent=0
    _
  %s5 = ssub.s32 1, %s3
  %s6 = scalar_select 0, %s5, %s3
  $region1: #{tpu_custom_call.1} parent=0
    #allocation2 [shape = 'u8[262144]{0}', space=vmem, size = 0x40000, scoped, tag = 'input window, operand 0']
    #allocation3 [shape = 's32[2]{0}', space=sflag, size = 0x8, scoped, tag = 'scoped memory for tpu_custom_call.1']
    #allocation4 [shape = 's32[2]{0}', space=sflag, size = 0x8, scoped, tag = 'scoped memory for tpu_custom_call.1']
    #allocation5 [shape = 'u8[131072]{0}', space=vmem, size = 0x20000, scoped, tag = 'input window, operand 1, single buffered']
    #allocation6 [shape = 's32[1]{0}', space=sflag, size = 0x4, scoped, tag = 'scoped memory for tpu_custom_call.1']
    #allocation7 [shape = 'u8[2048]{0}', space=vmem, size = 0x800, scoped, tag = 'output window, operand 0']
    %7 = vsyncpa [#allocation3], 0
    %s8 = scalar_lea.sflag [#allocation3], 1
    %9 = vsyncpa %s8, 0
    %10 = vsyncpa [#allocation6], 0
    %11 = vsyncpa [#allocation4], 0
    %s12 = scalar_lea.sflag [#allocation4], 1
    %13 = vsyncpa %s12, 0
    loop: start=0, step=1, limit=4
    $region2: #{tpu_custom_call.1} parent=1 // loop_pre_header
      _
    $region3: #{tpu_custom_call.1} parent=1 // loop_header
      %s15 = sphi 0, %s19
      %p16 = scmp.ge.s32.totalorder %s15, 4
      %s22 = sphi 0, %s34
      %s23 = sphi 0, %s30
      %s24 = sphi 0, %s22
      %s25 = sphi 0, %s23
      %s26 = sphi 0, %s24
      %s27 = sphi 0, %s25
      %s39 = sphi 0, %s41
      %s42 = sphi 0, %s39
      %s43 = sphi 0, %s42
      %s59 = sphi 0, %s43
      %s65 = sphi 0, %s67
      %s68 = sphi 0, %s65
      %s69 = sphi 0, %s68
      %s85 = sphi 0, %s69
      %s93 = sphi 0, %s95
      %s96 = sphi 0, %s93
      %s97 = sphi 0, %s96
      %s113 = sphi 0, %s97
    $region4: #{tpu_custom_call.1} parent=1 // loop_header_branch
      %18 = sbr.rel (%p16) target = $region8
    $region5: #{tpu_custom_call.1} parent=1 // loop_body
      %s20 = ssub.s32 %s15, 1
      %s21 = ssub.s32 %s15, 2
      %s28 = sadd.s32 1, %s23
      %p29 = scmp.ge.s32.totalorder %s28, 1
      %s30 = scalar_select %p29, 0, %s28
      %s31 = sadd.s32 1, %s22
      %s32 = scalar_select %p29, %s31, %s22
      %p33 = scmp.ge.s32.totalorder %s32, 2
      %s34 = scalar_select %p33, 0, %s32
      %s35 = ssub.s32 %s22, %s34
      %s36 = ssub.s32 %s23, %s30
      %s37 = sor.u32 %s35, %s36
      %p38 = scmp.eq.s32.totalorder %s37, 0
      %s40 = sadd.s32 %s39, 1
      %s41 = scalar_select %p38, %s39, %s40
      %p44 = pneg %p38
      %p45 = scmp.eq.s32.totalorder %s15, 1
      %p46 = por %p44, %p45
      %p47 = scmp.ne.s32.totalorder %s39, %s42
      %p48 = scmp.eq.s32.totalorder %s15, 0
      %p49 = por %p47, %p48
      %p50 = scmp.ne.s32.totalorder %s39, %s42
      %p51 = scmp.eq.s32.totalorder %s20, 1
      %p52 = por %p50, %p51
      %p53 = scmp.ne.s32.totalorder %s42, %s43
      %p54 = scmp.eq.s32.totalorder %s20, 0
      %p55 = por %p53, %p54
      %p56 = scmp.ne.s32.totalorder %s42, %s43
      %p57 = scmp.eq.s32.totalorder %s21, 1
      %p58 = por %p56, %p57
      %p60 = scmp.ne.s32.totalorder %s43, %s59
      %p61 = scmp.eq.s32.totalorder %s21, 0
      %p62 = por %p60, %p61
      %s63 = ssub.s32 %s22, %s34
      %p64 = scmp.eq.s32.totalorder %s63, 0
      %s66 = sadd.s32 %s65, 1
      %s67 = scalar_select %p64, %s65, %s66
      %p70 = pneg %p64
      %p71 = scmp.eq.s32.totalorder %s15, 1
      %p72 = por %p70, %p71
      %p73 = scmp.ne.s32.totalorder %s65, %s68
      %p74 = scmp.eq.s32.totalorder %s15, 0
      %p75 = por %p73, %p74
      %p76 = scmp.ne.s32.totalorder %s65, %s68
      %p77 = scmp.eq.s32.totalorder %s20, 1
      %p78 = por %p76, %p77
      %p79 = scmp.ne.s32.totalorder %s68, %s69
      %p80 = scmp.eq.s32.totalorder %s20, 0
      %p81 = por %p79, %p80
      %p82 = scmp.ne.s32.totalorder %s68, %s69
      %p83 = scmp.eq.s32.totalorder %s21, 1
      %p84 = por %p82, %p83
      %p86 = scmp.ne.s32.totalorder %s69, %s85
      %p87 = scmp.eq.s32.totalorder %s21, 0
      %p88 = por %p86, %p87
      %s89 = ssub.s32 %s22, %s34
      %s90 = ssub.s32 %s23, %s30
      %s91 = sor.u32 %s89, %s90
      %p92 = scmp.eq.s32.totalorder %s91, 0
      %s94 = sadd.s32 %s93, 1
      %s95 = scalar_select %p92, %s93, %s94
      %p98 = pneg %p92
      %p99 = scmp.eq.s32.totalorder %s15, 1
      %p100 = por %p98, %p99
      %p101 = scmp.ne.s32.totalorder %s93, %s96
      %p102 = scmp.eq.s32.totalorder %s15, 0
      %p103 = por %p101, %p102
      %p104 = scmp.ne.s32.totalorder %s93, %s96
      %p105 = scmp.eq.s32.totalorder %s20, 1
      %p106 = por %p104, %p105
      %p107 = scmp.ne.s32.totalorder %s96, %s97
      %p108 = scmp.eq.s32.totalorder %s20, 0
      %p109 = por %p107, %p108
      %p110 = scmp.ne.s32.totalorder %s96, %s97
      %p111 = scmp.eq.s32.totalorder %s21, 1
      %p112 = por %p110, %p111
      %p114 = scmp.ne.s32.totalorder %s97, %s113
      %p115 = scmp.eq.s32.totalorder %s21, 0
      %p116 = por %p114, %p115
      %p117 = scmp.le.s32.totalorder 1, %s15
      %p118 = scmp.lt.s32.totalorder %s15, 3
      %p119 = pnand %p117, %p118
      %p120 = pneg %p119
      // Predicated region
      $region9: #{tpu_custom_call.1} parent=5 // pred_check
        _
      $region10: #{tpu_custom_call.1} parent=5 // pred_check_branch
        %122 = sbr.rel (%p119) target = $region12
      $region11: #{tpu_custom_call.1} parent=5 // pred_region
        %s123 = ssub.s32 %s15, 1
        // Predicated region
        $region13: #{tpu_custom_call.1} parent=11 // pred_check
          %p124 = pneg %p81
        $region14: #{tpu_custom_call.1} parent=11 // pred_check_branch
          %126 = sbr.rel (%p124) target = $region16
        $region15: #{tpu_custom_call.1} parent=11 // pred_region
          %s128 = ssub.s32 4096, 4096
          %129 = vsyncadd [#allocation6], %s128
          %s130 = smul.addr %s24, 32
          %s131 = smul.addr %s130, 128
          %s132 = scalar_lea.hbm %s1, %s131
          %s133 = sshll.u32 [#allocation5], 4
          %s134 = int_to_ptr.vmem [resolvable:$true] %s133
          %139 = dma.hbm_to_vmem [thread:$0]  %s132, 4096, %s134, [#allocation6], 256, 256, 16
        $region16: #{tpu_custom_call.1} parent=11 // pred_fallthru
          _
      $region12: #{tpu_custom_call.1} parent=5 // pred_fallthru
        _
      %p140 = scmp.lt.s32.totalorder %s15, 2
      // Predicated region
      $region17: #{tpu_custom_call.1} parent=5 // pred_check
        %p141 = pneg %p140
      $region18: #{tpu_custom_call.1} parent=5 // pred_check_branch
        %143 = sbr.rel (%p141) target = $region20
      $region19: #{tpu_custom_call.1} parent=5 // pred_region
        // Predicated region
        $region21: #{tpu_custom_call.1} parent=19 // pred_check
          %p144 = pneg %p49
        $region22: #{tpu_custom_call.1} parent=19 // pred_check_branch
          %146 = sbr.rel (%p144) target = $region24
        $region23: #{tpu_custom_call.1} parent=19 // pred_region
          %s147 = sand.u32 %s39, 1
          %s148 = scalar_lea.sflag [#allocation3], %s147
          %s149 = sand.u32 %s39, 1
          %s150 = smul.addr %s149, 256
          %s151 = scalar_lea.vmem [#allocation2], %s150
          %s152 = smul.u32 32, %s23
          %s154 = ssub.s32 4096, 4096
          %155 = vsyncadd %s148, %s154
          %s156 = smul.addr %s22, 32
          %s157 = sadd.s32 %s152, %s156
          %s158 = smul.addr %s157, 128
          %s159 = scalar_lea.hbm %s0, %s158
          %s160 = sshll.u32 %s151, 4
          %s161 = int_to_ptr.vmem [resolvable:$true] %s160
          %166 = dma.hbm_to_vmem [thread:$0]  %s159, 4096, %s161, %s148, 128, 128, 8
        $region24: #{tpu_custom_call.1} parent=19 // pred_fallthru
          _
      $region20: #{tpu_custom_call.1} parent=5 // pred_fallthru
        _
      %p167 = scmp.le.s32.totalorder 1, %s15
      %p168 = scmp.lt.s32.totalorder %s15, 3
      %p169 = pnand %p167, %p168
      %p170 = pneg %p169
      // Predicated region
      $region25: #{tpu_custom_call.1} parent=5 // pred_check
        _
      $region26: #{tpu_custom_call.1} parent=5 // pred_check_branch
        %172 = sbr.rel (%p169) target = $region28
      $region27: #{tpu_custom_call.1} parent=5 // pred_region
        %s173 = ssub.s32 %s15, 1
        %s174 = sand.u32 %s42, 1
        %s175 = scalar_lea.sflag [#allocation3], %s174
        %s176 = sand.u32 %s42, 1
        %s177 = smul.addr %s176, 256
        %s178 = scalar_lea.vmem [#allocation2], %s177
        // Predicated region
        $region29: #{tpu_custom_call.1} parent=27 // pred_check
          %p179 = pneg %p55
        $region30: #{tpu_custom_call.1} parent=27 // pred_check_branch
          %181 = sbr.rel (%p179) target = $region32
        $region31: #{tpu_custom_call.1} parent=27 // pred_region
          %182 = dma.done %s175, 4096
        $region32: #{tpu_custom_call.1} parent=27 // pred_fallthru
          _
        // Predicated region
        $region33: #{tpu_custom_call.1} parent=27 // pred_check
          %p183 = pneg %p81
        $region34: #{tpu_custom_call.1} parent=27 // pred_check_branch
          %185 = sbr.rel (%p183) target = $region36
        $region35: #{tpu_custom_call.1} parent=27 // pred_region
          %186 = dma.done [#allocation6], 4096
        $region36: #{tpu_custom_call.1} parent=27 // pred_fallthru
          _
        %s187 = sand.u32 %s42, 1
        %s188 = scalar_lea.sflag [#allocation3], %s187
        %s189 = sand.u32 %s42, 1
        %s190 = smul.addr %s189, 256
        %s191 = scalar_lea.vmem [#allocation2], %s190
        %p192 = pneg %p55
        %p193 = pneg %p52
        %p194 = pneg %p81
        %p195 = pneg %p78
        %p196 = pneg %p109
        %p197 = pneg %p106
        %s198 = sand.u32 %s96, 1
        %s199 = scalar_lea.sflag [#allocation4], %s198
        %s200 = sand.u32 %s96, 1
        %s201 = smul.addr %s200, 2
        %s202 = scalar_lea.vmem [#allocation7], %s201
        %s203 = smul.u32 32, %s25
        %v204 = vld [vmem:[%s178] sm:$0xff]
        %v205 = vld [vmem:[%s178 + $0x8] sm:$0xff]
        %v206 = vld [vmem:[%s178 + $0x10] sm:$0xff]
        %v207 = vld [vmem:[%s178 + $0x18] sm:$0xff]
        %v208 = vld [vmem:[%s178 + $0x20] sm:$0xff]
        %v209 = vld [vmem:[%s178 + $0x28] sm:$0xff]
        %v210 = vld [vmem:[%s178 + $0x30] sm:$0xff]
        %v211 = vld [vmem:[%s178 + $0x38] sm:$0xff]
        %v212 = vld [vmem:[%s178 + $0x40] sm:$0xff]
        %v213 = vld [vmem:[%s178 + $0x48] sm:$0xff]
        %v214 = vld [vmem:[%s178 + $0x50] sm:$0xff]
        %v215 = vld [vmem:[%s178 + $0x58] sm:$0xff]
        %v216 = vld [vmem:[%s178 + $0x60] sm:$0xff]
        %v217 = vld [vmem:[%s178 + $0x68] sm:$0xff]
        %v218 = vld [vmem:[%s178 + $0x70] sm:$0xff]
        %v219 = vld [vmem:[%s178 + $0x78] sm:$0xff]
        %v220 = vld [vmem:[%s178 + $0x80] sm:$0xff]
        %v221 = vld [vmem:[%s178 + $0x88] sm:$0xff]
        %v222 = vld [vmem:[%s178 + $0x90] sm:$0xff]
        %v223 = vld [vmem:[%s178 + $0x98] sm:$0xff]
        %v224 = vld [vmem:[%s178 + $0xa0] sm:$0xff]
        %v225 = vld [vmem:[%s178 + $0xa8] sm:$0xff]
        %v226 = vld [vmem:[%s178 + $0xb0] sm:$0xff]
        %v227 = vld [vmem:[%s178 + $0xb8] sm:$0xff]
        %v228 = vld [vmem:[%s178 + $0xc0] sm:$0xff]
        %v229 = vld [vmem:[%s178 + $0xc8] sm:$0xff]
        %v230 = vld [vmem:[%s178 + $0xd0] sm:$0xff]
        %v231 = vld [vmem:[%s178 + $0xd8] sm:$0xff]
        %v232 = vld [vmem:[%s178 + $0xe0] sm:$0xff]
        %v233 = vld [vmem:[%s178 + $0xe8] sm:$0xff]
        %v234 = vld [vmem:[%s178 + $0xf0] sm:$0xff]
        %v235 = vld [vmem:[%s178 + $0xf8] sm:$0xff]
        %v236 = vld [vmem:[#allocation5] sm:$0xff]
        %v237 = vld [vmem:[#allocation5 + $0x8] sm:$0xff]
        %v238 = vld [vmem:[#allocation5 + $0x10] sm:$0xff]
        %v239 = vld [vmem:[#allocation5 + $0x18] sm:$0xff]
        %v240 = vld [vmem:[#allocation5 + $0x20] sm:$0xff]
        %v241 = vld [vmem:[#allocation5 + $0x28] sm:$0xff]
        %v242 = vld [vmem:[#allocation5 + $0x30] sm:$0xff]
        %v243 = vld [vmem:[#allocation5 + $0x38] sm:$0xff]
        %v244 = vld [vmem:[#allocation5 + $0x40] sm:$0xff]
        %v245 = vld [vmem:[#allocation5 + $0x48] sm:$0xff]
        %v246 = vld [vmem:[#allocation5 + $0x50] sm:$0xff]
        %v247 = vld [vmem:[#allocation5 + $0x58] sm:$0xff]
        %v248 = vld [vmem:[#allocation5 + $0x60] sm:$0xff]
        %v249 = vld [vmem:[#allocation5 + $0x68] sm:$0xff]
        %v250 = vld [vmem:[#allocation5 + $0x70] sm:$0xff]
        %v251 = vld [vmem:[#allocation5 + $0x78] sm:$0xff]
        %v252 = vld [vmem:[#allocation5 + $0x80] sm:$0xff]
        %v253 = vld [vmem:[#allocation5 + $0x88] sm:$0xff]
        %v254 = vld [vmem:[#allocation5 + $0x90] sm:$0xff]
        %v255 = vld [vmem:[#allocation5 + $0x98] sm:$0xff]
        %v256 = vld [vmem:[#allocation5 + $0xa0] sm:$0xff]
        %v257 = vld [vmem:[#allocation5 + $0xa8] sm:$0xff]
        %v258 = vld [vmem:[#allocation5 + $0xb0] sm:$0xff]
        %v259 = vld [vmem:[#allocation5 + $0xb8] sm:$0xff]
        %v260 = vld [vmem:[#allocation5 + $0xc0] sm:$0xff]
        %v261 = vld [vmem:[#allocation5 + $0xc8] sm:$0xff]
        %v262 = vld [vmem:[#allocation5 + $0xd0] sm:$0xff]
        %v263 = vld [vmem:[#allocation5 + $0xd8] sm:$0xff]
        %v264 = vld [vmem:[#allocation5 + $0xe0] sm:$0xff]
        %v265 = vld [vmem:[#allocation5 + $0xe8] sm:$0xff]
        %v266 = vld [vmem:[#allocation5 + $0xf0] sm:$0xff]
        %v267 = vld [vmem:[#allocation5 + $0xf8] sm:$0xff]
        %268 = vmatprep.subr.mxu0 %v267
        %269 = vmatpush1.msra.mxu0 %v266
        %270 = vmatprep.subr.mxu0 %v265
        %271 = vmatpush1.msra.mxu0 %v264
        %272 = vmatprep.subr.mxu0 %v263
        %273 = vmatpush1.msra.mxu0 %v262
        %274 = vmatprep.subr.mxu0 %v261
        %275 = vmatpush1.msra.mxu0 %v260
        %276 = vmatprep.subr.mxu0 %v259
        %277 = vmatpush1.msra.mxu0 %v258
        %278 = vmatprep.subr.mxu0 %v257
        %279 = vmatpush1.msra.mxu0 %v256
        %280 = vmatprep.subr.mxu0 %v255
        %281 = vmatpush1.msra.mxu0 %v254
        %282 = vmatprep.subr.mxu0 %v253
        %283 = vmatpush1.msra.mxu0 %v252
        %284 = vmatprep.subr.mxu0 %v251
        %285 = vmatpush1.msra.mxu0 %v250
        %286 = vmatprep.subr.mxu0 %v249
        %287 = vmatpush1.msra.mxu0 %v248
        %288 = vmatprep.subr.mxu0 %v247
        %289 = vmatpush1.msra.mxu0 %v246
        %290 = vmatprep.subr.mxu0 %v245
        %291 = vmatpush1.msra.mxu0 %v244
        %292 = vmatprep.subr.mxu0 %v243
        %293 = vmatpush1.msra.mxu0 %v242
        %294 = vmatprep.subr.mxu0 %v241
        %295 = vmatpush1.msra.mxu0 %v240
        %296 = vmatprep.subr.mxu0 %v239
        %297 = vmatpush1.msra.mxu0 %v238
        %298 = vmatprep.subr.mxu0 %v237
        %299 = vmatpush1.msra.mxu0 %v236
        %300 = vmatprep.subr.mxu0 0.0
        %301 = vmatpush2.msra.mxu0 0.0
        %302 = vmatprep.subr.mxu0 0.0
        %303 = vmatpush2.msra.mxu0 0.0
        %304 = vmatprep.subr.mxu0 0.0
        %305 = vmatpush2.msra.mxu0 0.0
        %306 = vmatprep.subr.mxu0 0.0
        %307 = vmatpush2.msra.mxu0 0.0
        %308 = vmatprep.subr.mxu0 0.0
        %309 = vmatpush2.msra.mxu0 0.0
        %310 = vmatprep.subr.mxu0 0.0
        %311 = vmatpush2.msra.mxu0 0.0
        %312 = vmatprep.subr.mxu0 0.0
        %313 = vmatpush2.msra.mxu0 0.0
        %314 = vmatprep.subr.mxu0 0.0
        %315 = vmatpush2.msra.mxu0 0.0
        %316 = vmatprep.subr.mxu0 0.0
        %317 = vmatpush2.msra.mxu0 0.0
        %318 = vmatprep.subr.mxu0 0.0
        %319 = vmatpush2.msra.mxu0 0.0
        %320 = vmatprep.subr.mxu0 0.0
        %321 = vmatpush2.msra.mxu0 0.0
        %322 = vmatprep.subr.mxu0 0.0
        %323 = vmatpush2.msra.mxu0 0.0
        %324 = vmatprep.subr.mxu0 0.0
        %325 = vmatpush2.msra.mxu0 0.0
        %326 = vmatprep.subr.mxu0 0.0
        %327 = vmatpush2.msra.mxu0 0.0
        %328 = vmatprep.subr.mxu0 0.0
        %329 = vmatpush2.msra.mxu0 0.0
        %330 = vmatprep.subr.mxu0 0.0
        %331 = vmatpush2.msra.mxu0 0.0
        %332 = vmatprep.mubr.f32.mxu0 0.0
        %333 = vmatmul.mubr.f32.gmra.mxu0 %v204
        %v334 = vpop.f32.mrf.mxu0
        %v335 = vadd.f32 0.0, %v334
        %v336 = vpop.f32.mrf.mxu0
        %v337 = vadd.f32 0.0, %v336
        %338 = vmatprep.mubr.f32.mxu0 0.0
        %339 = vmatmul.mubr.f32.gmra.mxu0 %v205
        %v340 = vpop.f32.mrf.mxu0
        %v341 = vadd.f32 0.0, %v340
        %v342 = vpop.f32.mrf.mxu0
        %v343 = vadd.f32 0.0, %v342
        %344 = vmatprep.mubr.f32.mxu0 0.0
        %345 = vmatmul.mubr.f32.gmra.mxu0 %v206
        %v346 = vpop.f32.mrf.mxu0
        %v347 = vadd.f32 0.0, %v346
        %v348 = vpop.f32.mrf.mxu0
        %v349 = vadd.f32 0.0, %v348
        %350 = vmatprep.mubr.f32.mxu0 0.0
        %351 = vmatmul.mubr.f32.gmra.mxu0 %v207
        %v352 = vpop.f32.mrf.mxu0
        %v353 = vadd.f32 0.0, %v352
        %v354 = vpop.f32.mrf.mxu0
        %v355 = vadd.f32 0.0, %v354
        %356 = vmatprep.mubr.f32.mxu0 0.0
        %357 = vmatmul.mubr.f32.gmra.mxu0 %v208
        %v358 = vpop.f32.mrf.mxu0
        %v359 = vadd.f32 0.0, %v358
        %v360 = vpop.f32.mrf.mxu0
        %v361 = vadd.f32 0.0, %v360
        %362 = vmatprep.mubr.f32.mxu0 0.0
        %363 = vmatmul.mubr.f32.gmra.mxu0 %v209
        %v364 = vpop.f32.mrf.mxu0
        %v365 = vadd.f32 0.0, %v364
        %v366 = vpop.f32.mrf.mxu0
        %v367 = vadd.f32 0.0, %v366
        %368 = vmatprep.mubr.f32.mxu0 0.0
        %369 = vmatmul.mubr.f32.gmra.mxu0 %v210
        %v370 = vpop.f32.mrf.mxu0
        %v371 = vadd.f32 0.0, %v370
        %v372 = vpop.f32.mrf.mxu0
        %v373 = vadd.f32 0.0, %v372
        %374 = vmatprep.mubr.f32.mxu0 0.0
        %375 = vmatmul.mubr.f32.gmra.mxu0 %v211
        %v376 = vpop.f32.mrf.mxu0
        %v377 = vadd.f32 0.0, %v376
        %v378 = vpop.f32.mrf.mxu0
        %v379 = vadd.f32 0.0, %v378
        %380 = vmatprep.mubr.f32.mxu0 0.0
        %381 = vmatmul.mubr.f32.gmra.mxu0 %v212
        %v382 = vpop.f32.mrf.mxu0
        %v383 = vadd.f32 0.0, %v382
        %v384 = vpop.f32.mrf.mxu0
        %v385 = vadd.f32 0.0, %v384
        %386 = vmatprep.mubr.f32.mxu0 0.0
        %387 = vmatmul.mubr.f32.gmra.mxu0 %v213
        %v388 = vpop.f32.mrf.mxu0
        %v389 = vadd.f32 0.0, %v388
        %v390 = vpop.f32.mrf.mxu0
        %v391 = vadd.f32 0.0, %v390
        %392 = vmatprep.mubr.f32.mxu0 0.0
        %393 = vmatmul.mubr.f32.gmra.mxu0 %v214
        %v394 = vpop.f32.mrf.mxu0
        %v395 = vadd.f32 0.0, %v394
        %v396 = vpop.f32.mrf.mxu0
        %v397 = vadd.f32 0.0, %v396
        %398 = vmatprep.mubr.f32.mxu0 0.0
        %399 = vmatmul.mubr.f32.gmra.mxu0 %v215
        %v400 = vpop.f32.mrf.mxu0
        %v401 = vadd.f32 0.0, %v400
        %v402 = vpop.f32.mrf.mxu0
        %v403 = vadd.f32 0.0, %v402
        %404 = vmatprep.mubr.f32.mxu0 0.0
        %405 = vmatmul.mubr.f32.gmra.mxu0 %v216
        %v406 = vpop.f32.mrf.mxu0
        %v407 = vadd.f32 0.0, %v406
        %v408 = vpop.f32.mrf.mxu0
        %v409 = vadd.f32 0.0, %v408
        %410 = vmatprep.mubr.f32.mxu0 0.0
        %411 = vmatmul.mubr.f32.gmra.mxu0 %v217
        %v412 = vpop.f32.mrf.mxu0
        %v413 = vadd.f32 0.0, %v412
        %v414 = vpop.f32.mrf.mxu0
        %v415 = vadd.f32 0.0, %v414
        %416 = vmatprep.mubr.f32.mxu0 0.0
        %417 = vmatmul.mubr.f32.gmra.mxu0 %v218
        %v418 = vpop.f32.mrf.mxu0
        %v419 = vadd.f32 0.0, %v418
        %v420 = vpop.f32.mrf.mxu0
        %v421 = vadd.f32 0.0, %v420
        %422 = vmatprep.mubr.f32.mxu0 0.0
        %423 = vmatmul.mubr.f32.gmra.mxu0 %v219
        %v424 = vpop.f32.mrf.mxu0
        %v425 = vadd.f32 0.0, %v424
        %v426 = vpop.f32.mrf.mxu0
        %v427 = vadd.f32 0.0, %v426
        %428 = vmatprep.mubr.f32.mxu0 0.0
        %429 = vmatmul.mubr.f32.gmra.mxu0 %v220
        %v430 = vpop.f32.mrf.mxu0
        %v431 = vadd.f32 0.0, %v430
        %v432 = vpop.f32.mrf.mxu0
        %v433 = vadd.f32 0.0, %v432
        %434 = vmatprep.mubr.f32.mxu0 0.0
        %435 = vmatmul.mubr.f32.gmra.mxu0 %v221
        %v436 = vpop.f32.mrf.mxu0
        %v437 = vadd.f32 0.0, %v436
        %v438 = vpop.f32.mrf.mxu0
        %v439 = vadd.f32 0.0, %v438
        %440 = vmatprep.mubr.f32.mxu0 0.0
        %441 = vmatmul.mubr.f32.gmra.mxu0 %v222
        %v442 = vpop.f32.mrf.mxu0
        %v443 = vadd.f32 0.0, %v442
        %v444 = vpop.f32.mrf.mxu0
        %v445 = vadd.f32 0.0, %v444
        %446 = vmatprep.mubr.f32.mxu0 0.0
        %447 = vmatmul.mubr.f32.gmra.mxu0 %v223
        %v448 = vpop.f32.mrf.mxu0
        %v449 = vadd.f32 0.0, %v448
        %v450 = vpop.f32.mrf.mxu0
        %v451 = vadd.f32 0.0, %v450
        %452 = vmatprep.mubr.f32.mxu0 0.0
        %453 = vmatmul.mubr.f32.gmra.mxu0 %v224
        %v454 = vpop.f32.mrf.mxu0
        %v455 = vadd.f32 0.0, %v454
        %v456 = vpop.f32.mrf.mxu0
        %v457 = vadd.f32 0.0, %v456
        %458 = vmatprep.mubr.f32.mxu0 0.0
        %459 = vmatmul.mubr.f32.gmra.mxu0 %v225
        %v460 = vpop.f32.mrf.mxu0
        %v461 = vadd.f32 0.0, %v460
        %v462 = vpop.f32.mrf.mxu0
        %v463 = vadd.f32 0.0, %v462
        %464 = vmatprep.mubr.f32.mxu0 0.0
        %465 = vmatmul.mubr.f32.gmra.mxu0 %v226
        %v466 = vpop.f32.mrf.mxu0
        %v467 = vadd.f32 0.0, %v466
        %v468 = vpop.f32.mrf.mxu0
        %v469 = vadd.f32 0.0, %v468
        %470 = vmatprep.mubr.f32.mxu0 0.0
        %471 = vmatmul.mubr.f32.gmra.mxu0 %v227
        %v472 = vpop.f32.mrf.mxu0
        %v473 = vadd.f32 0.0, %v472
        %v474 = vpop.f32.mrf.mxu0
        %v475 = vadd.f32 0.0, %v474
        %476 = vmatprep.mubr.f32.mxu0 0.0
        %477 = vmatmul.mubr.f32.gmra.mxu0 %v228
        %v478 = vpop.f32.mrf.mxu0
        %v479 = vadd.f32 0.0, %v478
        %v480 = vpop.f32.mrf.mxu0
        %v481 = vadd.f32 0.0, %v480
        %482 = vmatprep.mubr.f32.mxu0 0.0
        %483 = vmatmul.mubr.f32.gmra.mxu0 %v229
        %v484 = vpop.f32.mrf.mxu0
        %v485 = vadd.f32 0.0, %v484
        %v486 = vpop.f32.mrf.mxu0
        %v487 = vadd.f32 0.0, %v486
        %488 = vmatprep.mubr.f32.mxu0 0.0
        %489 = vmatmul.mubr.f32.gmra.mxu0 %v230
        %v490 = vpop.f32.mrf.mxu0
        %v491 = vadd.f32 0.0, %v490
        %v492 = vpop.f32.mrf.mxu0
        %v493 = vadd.f32 0.0, %v492
        %494 = vmatprep.mubr.f32.mxu0 0.0
        %495 = vmatmul.mubr.f32.gmra.mxu0 %v231
        %v496 = vpop.f32.mrf.mxu0
        %v497 = vadd.f32 0.0, %v496
        %v498 = vpop.f32.mrf.mxu0
        %v499 = vadd.f32 0.0, %v498
        %500 = vmatprep.mubr.f32.mxu0 0.0
        %501 = vmatmul.mubr.f32.gmra.mxu0 %v232
        %v502 = vpop.f32.mrf.mxu0
        %v503 = vadd.f32 0.0, %v502
        %v504 = vpop.f32.mrf.mxu0
        %v505 = vadd.f32 0.0, %v504
        %506 = vmatprep.mubr.f32.mxu0 0.0
        %507 = vmatmul.mubr.f32.gmra.mxu0 %v233
        %v508 = vpop.f32.mrf.mxu0
        %v509 = vadd.f32 0.0, %v508
        %v510 = vpop.f32.mrf.mxu0
        %v511 = vadd.f32 0.0, %v510
        %512 = vmatprep.mubr.f32.mxu0 0.0
        %513 = vmatmul.mubr.f32.gmra.mxu0 %v234
        %v514 = vpop.f32.mrf.mxu0
        %v515 = vadd.f32 0.0, %v514
        %v516 = vpop.f32.mrf.mxu0
        %v517 = vadd.f32 0.0, %v516
        %518 = vmatprep.mubr.f32.mxu0 0.0
        %519 = vmatmul.mubr.f32.gmra.mxu0 %v235
        %v520 = vpop.f32.mrf.mxu0
        %v521 = vadd.f32 0.0, %v520
        %v522 = vpop.f32.mrf.mxu0
        %v523 = vadd.f32 0.0, %v522
        %524 = vdwg.mxu0
        %v525 = vmax.f32 %v335, %v337
        %526 = vmax.xlane.f32.xlu0 %v525
        %v527 = vpop.xlane.xlu0 %526
        %v528 = vmax.f32 %v341, %v343
        %529 = vmax.xlane.f32.xlu0 %v528
        %v530 = vpop.xlane.xlu0 %529
        %v531 = vmax.f32 %v347, %v349
        %532 = vmax.xlane.f32.xlu0 %v531
        %v533 = vpop.xlane.xlu0 %532
        %v534 = vmax.f32 %v353, %v355
        %535 = vmax.xlane.f32.xlu0 %v534
        %v536 = vpop.xlane.xlu0 %535
        %v537 = vmax.f32 %v359, %v361
        %538 = vmax.xlane.f32.xlu0 %v537
        %v539 = vpop.xlane.xlu0 %538
        %v540 = vmax.f32 %v365, %v367
        %541 = vmax.xlane.f32.xlu0 %v540
        %v542 = vpop.xlane.xlu0 %541
        %v543 = vmax.f32 %v371, %v373
        %544 = vmax.xlane.f32.xlu0 %v543
        %v545 = vpop.xlane.xlu0 %544
        %v546 = vmax.f32 %v377, %v379
        %547 = vmax.xlane.f32.xlu0 %v546
        %v548 = vpop.xlane.xlu0 %547
        %v549 = vmax.f32 %v383, %v385
        %550 = vmax.xlane.f32.xlu0 %v549
        %v551 = vpop.xlane.xlu0 %550
        %v552 = vmax.f32 %v389, %v391
        %553 = vmax.xlane.f32.xlu0 %v552
        %v554 = vpop.xlane.xlu0 %553
        %v555 = vmax.f32 %v395, %v397
        %556 = vmax.xlane.f32.xlu0 %v555
        %v557 = vpop.xlane.xlu0 %556
        %v558 = vmax.f32 %v401, %v403
        %559 = vmax.xlane.f32.xlu0 %v558
        %v560 = vpop.xlane.xlu0 %559
        %v561 = vmax.f32 %v407, %v409
        %562 = vmax.xlane.f32.xlu0 %v561
        %v563 = vpop.xlane.xlu0 %562
        %v564 = vmax.f32 %v413, %v415
        %565 = vmax.xlane.f32.xlu0 %v564
        %v566 = vpop.xlane.xlu0 %565
        %v567 = vmax.f32 %v419, %v421
        %568 = vmax.xlane.f32.xlu0 %v567
        %v569 = vpop.xlane.xlu0 %568
        %v570 = vmax.f32 %v425, %v427
        %571 = vmax.xlane.f32.xlu0 %v570
        %v572 = vpop.xlane.xlu0 %571
        %v573 = vmax.f32 %v431, %v433
        %574 = vmax.xlane.f32.xlu0 %v573
        %v575 = vpop.xlane.xlu0 %574
        %v576 = vmax.f32 %v437, %v439
        %577 = vmax.xlane.f32.xlu0 %v576
        %v578 = vpop.xlane.xlu0 %577
        %v579 = vmax.f32 %v443, %v445
        %580 = vmax.xlane.f32.xlu0 %v579
        %v581 = vpop.xlane.xlu0 %580
        %v582 = vmax.f32 %v449, %v451
        %583 = vmax.xlane.f32.xlu0 %v582
        %v584 = vpop.xlane.xlu0 %583
        %v585 = vmax.f32 %v455, %v457
        %586 = vmax.xlane.f32.xlu0 %v585
        %v587 = vpop.xlane.xlu0 %586
        %v588 = vmax.f32 %v461, %v463
        %589 = vmax.xlane.f32.xlu0 %v588
        %v590 = vpop.xlane.xlu0 %589
        %v591 = vmax.f32 %v467, %v469
        %592 = vmax.xlane.f32.xlu0 %v591
        %v593 = vpop.xlane.xlu0 %592
        %v594 = vmax.f32 %v473, %v475
        %595 = vmax.xlane.f32.xlu0 %v594
        %v596 = vpop.xlane.xlu0 %595
        %v597 = vmax.f32 %v479, %v481
        %598 = vmax.xlane.f32.xlu0 %v597
        %v599 = vpop.xlane.xlu0 %598
        %v600 = vmax.f32 %v485, %v487
        %601 = vmax.xlane.f32.xlu0 %v600
        %v602 = vpop.xlane.xlu0 %601
        %v603 = vmax.f32 %v491, %v493
        %604 = vmax.xlane.f32.xlu0 %v603
        %v605 = vpop.xlane.xlu0 %604
        %v606 = vmax.f32 %v497, %v499
        %607 = vmax.xlane.f32.xlu0 %v606
        %v608 = vpop.xlane.xlu0 %607
        %v609 = vmax.f32 %v503, %v505
        %610 = vmax.xlane.f32.xlu0 %v609
        %v611 = vpop.xlane.xlu0 %610
        %v612 = vmax.f32 %v509, %v511
        %613 = vmax.xlane.f32.xlu0 %v612
        %v614 = vpop.xlane.xlu0 %613
        %v615 = vmax.f32 %v515, %v517
        %616 = vmax.xlane.f32.xlu0 %v615
        %v617 = vpop.xlane.xlu0 %616
        %v618 = vmax.f32 %v521, %v523
        %619 = vmax.xlane.f32.xlu0 %v618
        %v620 = vpop.xlane.xlu0 %619
        %v621 = vsub.f32 1.0, %v527
        %v622 = vsub.f32 1.0, %v530
        %v623 = vsub.f32 1.0, %v533
        %v624 = vsub.f32 1.0, %v536
        %v625 = vsub.f32 1.0, %v539
        %v626 = vsub.f32 1.0, %v542
        %v627 = vsub.f32 1.0, %v545
        %v628 = vsub.f32 1.0, %v548
        %v629 = vsub.f32 1.0, %v551
        %v630 = vsub.f32 1.0, %v554
        %v631 = vsub.f32 1.0, %v557
        %v632 = vsub.f32 1.0, %v560
        %v633 = vsub.f32 1.0, %v563
        %v634 = vsub.f32 1.0, %v566
        %v635 = vsub.f32 1.0, %v569
        %v636 = vsub.f32 1.0, %v572
        %v637 = vsub.f32 1.0, %v575
        %v638 = vsub.f32 1.0, %v578
        %v639 = vsub.f32 1.0, %v581
        %v640 = vsub.f32 1.0, %v584
        %v641 = vsub.f32 1.0, %v587
        %v642 = vsub.f32 1.0, %v590
        %v643 = vsub.f32 1.0, %v593
        %v644 = vsub.f32 1.0, %v596
        %v645 = vsub.f32 1.0, %v599
        %v646 = vsub.f32 1.0, %v602
        %v647 = vsub.f32 1.0, %v605
        %v648 = vsub.f32 1.0, %v608
        %v649 = vsub.f32 1.0, %v611
        %v650 = vsub.f32 1.0, %v614
        %v651 = vsub.f32 1.0, %v617
        %v652 = vsub.f32 1.0, %v620
        %v653 = vadd.f32 %v621, 1e-05
        %v654 = vadd.f32 %v622, 1e-05
        %v655 = vadd.f32 %v623, 1e-05
        %v656 = vadd.f32 %v624, 1e-05
        %v657 = vadd.f32 %v625, 1e-05
        %v658 = vadd.f32 %v626, 1e-05
        %v659 = vadd.f32 %v627, 1e-05
        %v660 = vadd.f32 %v628, 1e-05
        %v661 = vadd.f32 %v629, 1e-05
        %v662 = vadd.f32 %v630, 1e-05
        %v663 = vadd.f32 %v631, 1e-05
        %v664 = vadd.f32 %v632, 1e-05
        %v665 = vadd.f32 %v633, 1e-05
        %v666 = vadd.f32 %v634, 1e-05
        %v667 = vadd.f32 %v635, 1e-05
        %v668 = vadd.f32 %v636, 1e-05
        %v669 = vadd.f32 %v637, 1e-05
        %v670 = vadd.f32 %v638, 1e-05
        %v671 = vadd.f32 %v639, 1e-05
        %v672 = vadd.f32 %v640, 1e-05
        %v673 = vadd.f32 %v641, 1e-05
        %v674 = vadd.f32 %v642, 1e-05
        %v675 = vadd.f32 %v643, 1e-05
        %v676 = vadd.f32 %v644, 1e-05
        %v677 = vadd.f32 %v645, 1e-05
        %v678 = vadd.f32 %v646, 1e-05
        %v679 = vadd.f32 %v647, 1e-05
        %v680 = vadd.f32 %v648, 1e-05
        %v681 = vadd.f32 %v649, 1e-05
        %v682 = vadd.f32 %v650, 1e-05
        %v683 = vadd.f32 %v651, 1e-05
        %v684 = vadd.f32 %v652, 1e-05
        %v685 = vsub.f32 %v653, 1.0
        %v686 = vsub.f32 %v654, 1.0
        %v687 = vsub.f32 %v655, 1.0
        %v688 = vsub.f32 %v656, 1.0
        %v689 = vsub.f32 %v657, 1.0
        %v690 = vsub.f32 %v658, 1.0
        %v691 = vsub.f32 %v659, 1.0
        %v692 = vsub.f32 %v660, 1.0
        %v693 = vsub.f32 %v661, 1.0
        %v694 = vsub.f32 %v662, 1.0
        %v695 = vsub.f32 %v663, 1.0
        %v696 = vsub.f32 %v664, 1.0
        %v697 = vsub.f32 %v665, 1.0
        %v698 = vsub.f32 %v666, 1.0
        %v699 = vsub.f32 %v667, 1.0
        %v700 = vsub.f32 %v668, 1.0
        %v701 = vsub.f32 %v669, 1.0
        %v702 = vsub.f32 %v670, 1.0
        %v703 = vsub.f32 %v671, 1.0
        %v704 = vsub.f32 %v672, 1.0
        %v705 = vsub.f32 %v673, 1.0
        %v706 = vsub.f32 %v674, 1.0
        %v707 = vsub.f32 %v675, 1.0
        %v708 = vsub.f32 %v676, 1.0
        %v709 = vsub.f32 %v677, 1.0
        %v710 = vsub.f32 %v678, 1.0
        %v711 = vsub.f32 %v679, 1.0
        %v712 = vsub.f32 %v680, 1.0
        %v713 = vsub.f32 %v681, 1.0
        %v714 = vsub.f32 %v682, 1.0
        %v715 = vsub.f32 %v683, 1.0
        %v716 = vsub.f32 %v684, 1.0
        %v717 = vmul.f32 %v653, 0.5
        %v718 = vmul.f32 %v654, 0.5
        %v719 = vmul.f32 %v655, 0.5
        %v720 = vmul.f32 %v656, 0.5
        %v721 = vmul.f32 %v657, 0.5
        %v722 = vmul.f32 %v658, 0.5
        %v723 = vmul.f32 %v659, 0.5
        %v724 = vmul.f32 %v660, 0.5
        %v725 = vmul.f32 %v661, 0.5
        %v726 = vmul.f32 %v662, 0.5
        %v727 = vmul.f32 %v663, 0.5
        %v728 = vmul.f32 %v664, 0.5
        %v729 = vmul.f32 %v665, 0.5
        %v730 = vmul.f32 %v666, 0.5
        %v731 = vmul.f32 %v667, 0.5
        %v732 = vmul.f32 %v668, 0.5
        %v733 = vmul.f32 %v669, 0.5
        %v734 = vmul.f32 %v670, 0.5
        %v735 = vmul.f32 %v671, 0.5
        %v736 = vmul.f32 %v672, 0.5
        %v737 = vmul.f32 %v673, 0.5
        %v738 = vmul.f32 %v674, 0.5
        %v739 = vmul.f32 %v675, 0.5
        %v740 = vmul.f32 %v676, 0.5
        %v741 = vmul.f32 %v677, 0.5
        %v742 = vmul.f32 %v678, 0.5
        %v743 = vmul.f32 %v679, 0.5
        %v744 = vmul.f32 %v680, 0.5
        %v745 = vmul.f32 %v681, 0.5
        %v746 = vmul.f32 %v682, 0.5
        %v747 = vmul.f32 %v683, 0.5
        %v748 = vmul.f32 %v684, 0.5
        %v749 = vrcp.pop %v717
        %v750 = vmul.f32 1.0, %v749
        %v751 = vrcp.pop %v718
        %v752 = vmul.f32 1.0, %v751
        %v753 = vrcp.pop %v719
        %v754 = vmul.f32 1.0, %v753
        %v755 = vrcp.pop %v720
        %v756 = vmul.f32 1.0, %v755
        %v757 = vrcp.pop %v721
        %v758 = vmul.f32 1.0, %v757
        %v759 = vrcp.pop %v722
        %v760 = vmul.f32 1.0, %v759
        %v761 = vrcp.pop %v723
        %v762 = vmul.f32 1.0, %v761
        %v763 = vrcp.pop %v724
        %v764 = vmul.f32 1.0, %v763
        %v765 = vrcp.pop %v725
        %v766 = vmul.f32 1.0, %v765
        %v767 = vrcp.pop %v726
        %v768 = vmul.f32 1.0, %v767
        %v769 = vrcp.pop %v727
        %v770 = vmul.f32 1.0, %v769
        %v771 = vrcp.pop %v728
        %v772 = vmul.f32 1.0, %v771
        %v773 = vrcp.pop %v729
        %v774 = vmul.f32 1.0, %v773
        %v775 = vrcp.pop %v730
        %v776 = vmul.f32 1.0, %v775
        %v777 = vrcp.pop %v731
        %v778 = vmul.f32 1.0, %v777
        %v779 = vrcp.pop %v732
        %v780 = vmul.f32 1.0, %v779
        %v781 = vrcp.pop %v733
        %v782 = vmul.f32 1.0, %v781
        %v783 = vrcp.pop %v734
        %v784 = vmul.f32 1.0, %v783
        %v785 = vrcp.pop %v735
        %v786 = vmul.f32 1.0, %v785
        %v787 = vrcp.pop %v736
        %v788 = vmul.f32 1.0, %v787
        %v789 = vrcp.pop %v737
        %v790 = vmul.f32 1.0, %v789
        %v791 = vrcp.pop %v738
        %v792 = vmul.f32 1.0, %v791
        %v793 = vrcp.pop %v739
        %v794 = vmul.f32 1.0, %v793
        %v795 = vrcp.pop %v740
        %v796 = vmul.f32 1.0, %v795
        %v797 = vrcp.pop %v741
        %v798 = vmul.f32 1.0, %v797
        %v799 = vrcp.pop %v742
        %v800 = vmul.f32 1.0, %v799
        %v801 = vrcp.pop %v743
        %v802 = vmul.f32 1.0, %v801
        %v803 = vrcp.pop %v744
        %v804 = vmul.f32 1.0, %v803
        %v805 = vrcp.pop %v745
        %v806 = vmul.f32 1.0, %v805
        %v807 = vrcp.pop %v746
        %v808 = vmul.f32 1.0, %v807
        %v809 = vrcp.pop %v747
        %v810 = vmul.f32 1.0, %v809
        %v811 = vrcp.pop %v748
        %v812 = vmul.f32 1.0, %v811
        %v813 = vadd.f32 %v335, %v685
        %v814 = vadd.f32 %v337, %v685
        %v815 = vadd.f32 %v341, %v686
        %v816 = vadd.f32 %v343, %v686
        %v817 = vadd.f32 %v347, %v687
        %v818 = vadd.f32 %v349, %v687
        %v819 = vadd.f32 %v353, %v688
        %v820 = vadd.f32 %v355, %v688
        %v821 = vadd.f32 %v359, %v689
        %v822 = vadd.f32 %v361, %v689
        %v823 = vadd.f32 %v365, %v690
        %v824 = vadd.f32 %v367, %v690
        %v825 = vadd.f32 %v371, %v691
        %v826 = vadd.f32 %v373, %v691
        %v827 = vadd.f32 %v377, %v692
        %v828 = vadd.f32 %v379, %v692
        %v829 = vadd.f32 %v383, %v693
        %v830 = vadd.f32 %v385, %v693
        %v831 = vadd.f32 %v389, %v694
        %v832 = vadd.f32 %v391, %v694
        %v833 = vadd.f32 %v395, %v695
        %v834 = vadd.f32 %v397, %v695
        %v835 = vadd.f32 %v401, %v696
        %v836 = vadd.f32 %v403, %v696
        %v837 = vadd.f32 %v407, %v697
        %v838 = vadd.f32 %v409, %v697
        %v839 = vadd.f32 %v413, %v698
        %v840 = vadd.f32 %v415, %v698
        %v841 = vadd.f32 %v419, %v699
        %v842 = vadd.f32 %v421, %v699
        %v843 = vadd.f32 %v425, %v700
        %v844 = vadd.f32 %v427, %v700
        %v845 = vadd.f32 %v431, %v701
        %v846 = vadd.f32 %v433, %v701
        %v847 = vadd.f32 %v437, %v702
        %v848 = vadd.f32 %v439, %v702
        %v849 = vadd.f32 %v443, %v703
        %v850 = vadd.f32 %v445, %v703
        %v851 = vadd.f32 %v449, %v704
        %v852 = vadd.f32 %v451, %v704
        %v853 = vadd.f32 %v455, %v705
        %v854 = vadd.f32 %v457, %v705
        %v855 = vadd.f32 %v461, %v706
        %v856 = vadd.f32 %v463, %v706
        %v857 = vadd.f32 %v467, %v707
        %v858 = vadd.f32 %v469, %v707
        %v859 = vadd.f32 %v473, %v708
        %v860 = vadd.f32 %v475, %v708
        %v861 = vadd.f32 %v479, %v709
        %v862 = vadd.f32 %v481, %v709
        %v863 = vadd.f32 %v485, %v710
        %v864 = vadd.f32 %v487, %v710
        %v865 = vadd.f32 %v491, %v711
        %v866 = vadd.f32 %v493, %v711
        %v867 = vadd.f32 %v497, %v712
        %v868 = vadd.f32 %v499, %v712
        %v869 = vadd.f32 %v503, %v713
        %v870 = vadd.f32 %v505, %v713
        %v871 = vadd.f32 %v509, %v714
        %v872 = vadd.f32 %v511, %v714
        %v873 = vadd.f32 %v515, %v715
        %v874 = vadd.f32 %v517, %v715
        %v875 = vadd.f32 %v521, %v716
        %v876 = vadd.f32 %v523, %v716
        %v877 = vmul.f32 %v813, %v750
        %v878 = vmul.f32 %v814, %v750
        %v879 = vmul.f32 %v815, %v752
        %v880 = vmul.f32 %v816, %v752
        %v881 = vmul.f32 %v817, %v754
        %v882 = vmul.f32 %v818, %v754
        %v883 = vmul.f32 %v819, %v756
        %v884 = vmul.f32 %v820, %v756
        %v885 = vmul.f32 %v821, %v758
        %v886 = vmul.f32 %v822, %v758
        %v887 = vmul.f32 %v823, %v760
        %v888 = vmul.f32 %v824, %v760
        %v889 = vmul.f32 %v825, %v762
        %v890 = vmul.f32 %v826, %v762
        %v891 = vmul.f32 %v827, %v764
        %v892 = vmul.f32 %v828, %v764
        %v893 = vmul.f32 %v829, %v766
        %v894 = vmul.f32 %v830, %v766
        %v895 = vmul.f32 %v831, %v768
        %v896 = vmul.f32 %v832, %v768
        %v897 = vmul.f32 %v833, %v770
        %v898 = vmul.f32 %v834, %v770
        %v899 = vmul.f32 %v835, %v772
        %v900 = vmul.f32 %v836, %v772
        %v901 = vmul.f32 %v837, %v774
        %v902 = vmul.f32 %v838, %v774
        %v903 = vmul.f32 %v839, %v776
        %v904 = vmul.f32 %v840, %v776
        %v905 = vmul.f32 %v841, %v778
        %v906 = vmul.f32 %v842, %v778
        %v907 = vmul.f32 %v843, %v780
        %v908 = vmul.f32 %v844, %v780
        %v909 = vmul.f32 %v845, %v782
        %v910 = vmul.f32 %v846, %v782
        %v911 = vmul.f32 %v847, %v784
        %v912 = vmul.f32 %v848, %v784
        %v913 = vmul.f32 %v849, %v786
        %v914 = vmul.f32 %v850, %v786
        %v915 = vmul.f32 %v851, %v788
        %v916 = vmul.f32 %v852, %v788
        %v917 = vmul.f32 %v853, %v790
        %v918 = vmul.f32 %v854, %v790
        %v919 = vmul.f32 %v855, %v792
        %v920 = vmul.f32 %v856, %v792
        %v921 = vmul.f32 %v857, %v794
        %v922 = vmul.f32 %v858, %v794
        %v923 = vmul.f32 %v859, %v796
        %v924 = vmul.f32 %v860, %v796
        %v925 = vmul.f32 %v861, %v798
        %v926 = vmul.f32 %v862, %v798
        %v927 = vmul.f32 %v863, %v800
        %v928 = vmul.f32 %v864, %v800
        %v929 = vmul.f32 %v865, %v802
        %v930 = vmul.f32 %v866, %v802
        %v931 = vmul.f32 %v867, %v804
        %v932 = vmul.f32 %v868, %v804
        %v933 = vmul.f32 %v869, %v806
        %v934 = vmul.f32 %v870, %v806
        %v935 = vmul.f32 %v871, %v808
        %v936 = vmul.f32 %v872, %v808
        %v937 = vmul.f32 %v873, %v810
        %v938 = vmul.f32 %v874, %v810
        %v939 = vmul.f32 %v875, %v812
        %v940 = vmul.f32 %v876, %v812
        %v941 = vmul.f32 %v877, 1.442695
        %v942 = vpow.pop %v941
        %v943 = vmul.f32 %v878, 1.442695
        %v944 = vpow.pop %v943
        %v945 = vmul.f32 %v879, 1.442695
        %v946 = vpow.pop %v945
        %v947 = vmul.f32 %v880, 1.442695
        %v948 = vpow.pop %v947
        %v949 = vmul.f32 %v881, 1.442695
        %v950 = vpow.pop %v949
        %v951 = vmul.f32 %v882, 1.442695
        %v952 = vpow.pop %v951
        %v953 = vmul.f32 %v883, 1.442695
        %v954 = vpow.pop %v953
        %v955 = vmul.f32 %v884, 1.442695
        %v956 = vpow.pop %v955
        %v957 = vmul.f32 %v885, 1.442695
        %v958 = vpow.pop %v957
        %v959 = vmul.f32 %v886, 1.442695
        %v960 = vpow.pop %v959
        %v961 = vmul.f32 %v887, 1.442695
        %v962 = vpow.pop %v961
        %v963 = vmul.f32 %v888, 1.442695
        %v964 = vpow.pop %v963
        %v965 = vmul.f32 %v889, 1.442695
        %v966 = vpow.pop %v965
        %v967 = vmul.f32 %v890, 1.442695
        %v968 = vpow.pop %v967
        %v969 = vmul.f32 %v891, 1.442695
        %v970 = vpow.pop %v969
        %v971 = vmul.f32 %v892, 1.442695
        %v972 = vpow.pop %v971
        %v973 = vmul.f32 %v893, 1.442695
        %v974 = vpow.pop %v973
        %v975 = vmul.f32 %v894, 1.442695
        %v976 = vpow.pop %v975
        %v977 = vmul.f32 %v895, 1.442695
        %v978 = vpow.pop %v977
        %v979 = vmul.f32 %v896, 1.442695
        %v980 = vpow.pop %v979
        %v981 = vmul.f32 %v897, 1.442695
        %v982 = vpow.pop %v981
        %v983 = vmul.f32 %v898, 1.442695
        %v984 = vpow.pop %v983
        %v985 = vmul.f32 %v899, 1.442695
        %v986 = vpow.pop %v985
        %v987 = vmul.f32 %v900, 1.442695
        %v988 = vpow.pop %v987
        %v989 = vmul.f32 %v901, 1.442695
        %v990 = vpow.pop %v989
        %v991 = vmul.f32 %v902, 1.442695
        %v992 = vpow.pop %v991
        %v993 = vmul.f32 %v903, 1.442695
        %v994 = vpow.pop %v993
        %v995 = vmul.f32 %v904, 1.442695
        %v996 = vpow.pop %v995
        %v997 = vmul.f32 %v905, 1.442695
        %v998 = vpow.pop %v997
        %v999 = vmul.f32 %v906, 1.442695
        %v1000 = vpow.pop %v999
        %v1001 = vmul.f32 %v907, 1.442695
        %v1002 = vpow.pop %v1001
        %v1003 = vmul.f32 %v908, 1.442695
        %v1004 = vpow.pop %v1003
        %v1005 = vmul.f32 %v909, 1.442695
        %v1006 = vpow.pop %v1005
        %v1007 = vmul.f32 %v910, 1.442695
        %v1008 = vpow.pop %v1007
        %v1009 = vmul.f32 %v911, 1.442695
        %v1010 = vpow.pop %v1009
        %v1011 = vmul.f32 %v912, 1.442695
        %v1012 = vpow.pop %v1011
        %v1013 = vmul.f32 %v913, 1.442695
        %v1014 = vpow.pop %v1013
        %v1015 = vmul.f32 %v914, 1.442695
        %v1016 = vpow.pop %v1015
        %v1017 = vmul.f32 %v915, 1.442695
        %v1018 = vpow.pop %v1017
        %v1019 = vmul.f32 %v916, 1.442695
        %v1020 = vpow.pop %v1019
        %v1021 = vmul.f32 %v917, 1.442695
        %v1022 = vpow.pop %v1021
        %v1023 = vmul.f32 %v918, 1.442695
        %v1024 = vpow.pop %v1023
        %v1025 = vmul.f32 %v919, 1.442695
        %v1026 = vpow.pop %v1025
        %v1027 = vmul.f32 %v920, 1.442695
        %v1028 = vpow.pop %v1027
        %v1029 = vmul.f32 %v921, 1.442695
        %v1030 = vpow.pop %v1029
        %v1031 = vmul.f32 %v922, 1.442695
        %v1032 = vpow.pop %v1031
        %v1033 = vmul.f32 %v923, 1.442695
        %v1034 = vpow.pop %v1033
        %v1035 = vmul.f32 %v924, 1.442695
        %v1036 = vpow.pop %v1035
        %v1037 = vmul.f32 %v925, 1.442695
        %v1038 = vpow.pop %v1037
        %v1039 = vmul.f32 %v926, 1.442695
        %v1040 = vpow.pop %v1039
        %v1041 = vmul.f32 %v927, 1.442695
        %v1042 = vpow.pop %v1041
        %v1043 = vmul.f32 %v928, 1.442695
        %v1044 = vpow.pop %v1043
        %v1045 = vmul.f32 %v929, 1.442695
        %v1046 = vpow.pop %v1045
        %v1047 = vmul.f32 %v930, 1.442695
        %v1048 = vpow.pop %v1047
        %v1049 = vmul.f32 %v931, 1.442695
        %v1050 = vpow.pop %v1049
        %v1051 = vmul.f32 %v932, 1.442695
        %v1052 = vpow.pop %v1051
        %v1053 = vmul.f32 %v933, 1.442695
        %v1054 = vpow.pop %v1053
        %v1055 = vmul.f32 %v934, 1.442695
        %v1056 = vpow.pop %v1055
        %v1057 = vmul.f32 %v935, 1.442695
        %v1058 = vpow.pop %v1057
        %v1059 = vmul.f32 %v936, 1.442695
        %v1060 = vpow.pop %v1059
        %v1061 = vmul.f32 %v937, 1.442695
        %v1062 = vpow.pop %v1061
        %v1063 = vmul.f32 %v938, 1.442695
        %v1064 = vpow.pop %v1063
        %v1065 = vmul.f32 %v939, 1.442695
        %v1066 = vpow.pop %v1065
        %v1067 = vmul.f32 %v940, 1.442695
        %v1068 = vpow.pop %v1067
        %v1069 = vadd.f32 %v942, %v944
        %1070 = vadd.xlane.f32.xlu0 %v1069
        %v1071 = vpop.xlane.xlu0 %1070
        %v1072 = vadd.f32 %v946, %v948
        %1073 = vadd.xlane.f32.xlu0 %v1072
        %v1074 = vpop.xlane.xlu0 %1073
        %v1075 = vadd.f32 %v950, %v952
        %1076 = vadd.xlane.f32.xlu0 %v1075
        %v1077 = vpop.xlane.xlu0 %1076
        %v1078 = vadd.f32 %v954, %v956
        %1079 = vadd.xlane.f32.xlu0 %v1078
        %v1080 = vpop.xlane.xlu0 %1079
        %v1081 = vadd.f32 %v958, %v960
        %1082 = vadd.xlane.f32.xlu0 %v1081
        %v1083 = vpop.xlane.xlu0 %1082
        %v1084 = vadd.f32 %v962, %v964
        %1085 = vadd.xlane.f32.xlu0 %v1084
        %v1086 = vpop.xlane.xlu0 %1085
        %v1087 = vadd.f32 %v966, %v968
        %1088 = vadd.xlane.f32.xlu0 %v1087
        %v1089 = vpop.xlane.xlu0 %1088
        %v1090 = vadd.f32 %v970, %v972
        %1091 = vadd.xlane.f32.xlu0 %v1090
        %v1092 = vpop.xlane.xlu0 %1091
        %v1093 = vadd.f32 %v974, %v976
        %1094 = vadd.xlane.f32.xlu0 %v1093
        %v1095 = vpop.xlane.xlu0 %1094
        %v1096 = vadd.f32 %v978, %v980
        %1097 = vadd.xlane.f32.xlu0 %v1096
        %v1098 = vpop.xlane.xlu0 %1097
        %v1099 = vadd.f32 %v982, %v984
        %1100 = vadd.xlane.f32.xlu0 %v1099
        %v1101 = vpop.xlane.xlu0 %1100
        %v1102 = vadd.f32 %v986, %v988
        %1103 = vadd.xlane.f32.xlu0 %v1102
        %v1104 = vpop.xlane.xlu0 %1103
        %v1105 = vadd.f32 %v990, %v992
        %1106 = vadd.xlane.f32.xlu0 %v1105
        %v1107 = vpop.xlane.xlu0 %1106
        %v1108 = vadd.f32 %v994, %v996
        %1109 = vadd.xlane.f32.xlu0 %v1108
        %v1110 = vpop.xlane.xlu0 %1109
        %v1111 = vadd.f32 %v998, %v1000
        %1112 = vadd.xlane.f32.xlu0 %v1111
        %v1113 = vpop.xlane.xlu0 %1112
        %v1114 = vadd.f32 %v1002, %v1004
        %1115 = vadd.xlane.f32.xlu0 %v1114
        %v1116 = vpop.xlane.xlu0 %1115
        %v1117 = vadd.f32 %v1006, %v1008
        %1118 = vadd.xlane.f32.xlu0 %v1117
        %v1119 = vpop.xlane.xlu0 %1118
        %v1120 = vadd.f32 %v1010, %v1012
        %1121 = vadd.xlane.f32.xlu0 %v1120
        %v1122 = vpop.xlane.xlu0 %1121
        %v1123 = vadd.f32 %v1014, %v1016
        %1124 = vadd.xlane.f32.xlu0 %v1123
        %v1125 = vpop.xlane.xlu0 %1124
        %v1126 = vadd.f32 %v1018, %v1020
        %1127 = vadd.xlane.f32.xlu0 %v1126
        %v1128 = vpop.xlane.xlu0 %1127
        %v1129 = vadd.f32 %v1022, %v1024
        %1130 = vadd.xlane.f32.xlu0 %v1129
        %v1131 = vpop.xlane.xlu0 %1130
        %v1132 = vadd.f32 %v1026, %v1028
        %1133 = vadd.xlane.f32.xlu0 %v1132
        %v1134 = vpop.xlane.xlu0 %1133
        %v1135 = vadd.f32 %v1030, %v1032
        %1136 = vadd.xlane.f32.xlu0 %v1135
        %v1137 = vpop.xlane.xlu0 %1136
        %v1138 = vadd.f32 %v1034, %v1036
        %1139 = vadd.xlane.f32.xlu0 %v1138
        %v1140 = vpop.xlane.xlu0 %1139
        %v1141 = vadd.f32 %v1038, %v1040
        %1142 = vadd.xlane.f32.xlu0 %v1141
        %v1143 = vpop.xlane.xlu0 %1142
        %v1144 = vadd.f32 %v1042, %v1044
        %1145 = vadd.xlane.f32.xlu0 %v1144
        %v1146 = vpop.xlane.xlu0 %1145
        %v1147 = vadd.f32 %v1046, %v1048
        %1148 = vadd.xlane.f32.xlu0 %v1147
        %v1149 = vpop.xlane.xlu0 %1148
        %v1150 = vadd.f32 %v1050, %v1052
        %1151 = vadd.xlane.f32.xlu0 %v1150
        %v1152 = vpop.xlane.xlu0 %1151
        %v1153 = vadd.f32 %v1054, %v1056
        %1154 = vadd.xlane.f32.xlu0 %v1153
        %v1155 = vpop.xlane.xlu0 %1154
        %v1156 = vadd.f32 %v1058, %v1060
        %1157 = vadd.xlane.f32.xlu0 %v1156
        %v1158 = vpop.xlane.xlu0 %1157
        %v1159 = vadd.f32 %v1062, %v1064
        %1160 = vadd.xlane.f32.xlu0 %v1159
        %v1161 = vpop.xlane.xlu0 %1160
        %v1162 = vadd.f32 %v1066, %v1068
        %1163 = vadd.xlane.f32.xlu0 %v1162
        %v1164 = vpop.xlane.xlu0 %1163
        %v1165 = vrcp.pop %v1071
        %v1166 = vmul.f32 1.0, %v1165
        %v1167 = vrcp.pop %v1074
        %v1168 = vmul.f32 1.0, %v1167
        %v1169 = vrcp.pop %v1077
        %v1170 = vmul.f32 1.0, %v1169
        %v1171 = vrcp.pop %v1080
        %v1172 = vmul.f32 1.0, %v1171
        %v1173 = vrcp.pop %v1083
        %v1174 = vmul.f32 1.0, %v1173
        %v1175 = vrcp.pop %v1086
        %v1176 = vmul.f32 1.0, %v1175
        %v1177 = vrcp.pop %v1089
        %v1178 = vmul.f32 1.0, %v1177
        %v1179 = vrcp.pop %v1092
        %v1180 = vmul.f32 1.0, %v1179
        %v1181 = vrcp.pop %v1095
        %v1182 = vmul.f32 1.0, %v1181
        %v1183 = vrcp.pop %v1098
        %v1184 = vmul.f32 1.0, %v1183
        %v1185 = vrcp.pop %v1101
        %v1186 = vmul.f32 1.0, %v1185
        %v1187 = vrcp.pop %v1104
        %v1188 = vmul.f32 1.0, %v1187
        %v1189 = vrcp.pop %v1107
        %v1190 = vmul.f32 1.0, %v1189
        %v1191 = vrcp.pop %v1110
        %v1192 = vmul.f32 1.0, %v1191
        %v1193 = vrcp.pop %v1113
        %v1194 = vmul.f32 1.0, %v1193
        %v1195 = vrcp.pop %v1116
        %v1196 = vmul.f32 1.0, %v1195
        %v1197 = vrcp.pop %v1119
        %v1198 = vmul.f32 1.0, %v1197
        %v1199 = vrcp.pop %v1122
        %v1200 = vmul.f32 1.0, %v1199
        %v1201 = vrcp.pop %v1125
        %v1202 = vmul.f32 1.0, %v1201
        %v1203 = vrcp.pop %v1128
        %v1204 = vmul.f32 1.0, %v1203
        %v1205 = vrcp.pop %v1131
        %v1206 = vmul.f32 1.0, %v1205
        %v1207 = vrcp.pop %v1134
        %v1208 = vmul.f32 1.0, %v1207
        %v1209 = vrcp.pop %v1137
        %v1210 = vmul.f32 1.0, %v1209
        %v1211 = vrcp.pop %v1140
        %v1212 = vmul.f32 1.0, %v1211
        %v1213 = vrcp.pop %v1143
        %v1214 = vmul.f32 1.0, %v1213
        %v1215 = vrcp.pop %v1146
        %v1216 = vmul.f32 1.0, %v1215
        %v1217 = vrcp.pop %v1149
        %v1218 = vmul.f32 1.0, %v1217
        %v1219 = vrcp.pop %v1152
        %v1220 = vmul.f32 1.0, %v1219
        %v1221 = vrcp.pop %v1155
        %v1222 = vmul.f32 1.0, %v1221
        %v1223 = vrcp.pop %v1158
        %v1224 = vmul.f32 1.0, %v1223
        %v1225 = vrcp.pop %v1161
        %v1226 = vmul.f32 1.0, %v1225
        %v1227 = vrcp.pop %v1164
        %v1228 = vmul.f32 1.0, %v1227
        %v1229 = vmul.f32 %v942, %v1166
        %v1230 = vmul.f32 %v944, %v1166
        %v1231 = vmul.f32 %v946, %v1168
        %v1232 = vmul.f32 %v948, %v1168
        %v1233 = vmul.f32 %v950, %v1170
        %v1234 = vmul.f32 %v952, %v1170
        %v1235 = vmul.f32 %v954, %v1172
        %v1236 = vmul.f32 %v956, %v1172
        %v1237 = vmul.f32 %v958, %v1174
        %v1238 = vmul.f32 %v960, %v1174
        %v1239 = vmul.f32 %v962, %v1176
        %v1240 = vmul.f32 %v964, %v1176
        %v1241 = vmul.f32 %v966, %v1178
        %v1242 = vmul.f32 %v968, %v1178
        %v1243 = vmul.f32 %v970, %v1180
        %v1244 = vmul.f32 %v972, %v1180
        %v1245 = vmul.f32 %v974, %v1182
        %v1246 = vmul.f32 %v976, %v1182
        %v1247 = vmul.f32 %v978, %v1184
        %v1248 = vmul.f32 %v980, %v1184
        %v1249 = vmul.f32 %v982, %v1186
        %v1250 = vmul.f32 %v984, %v1186
        %v1251 = vmul.f32 %v986, %v1188
        %v1252 = vmul.f32 %v988, %v1188
        %v1253 = vmul.f32 %v990, %v1190
        %v1254 = vmul.f32 %v992, %v1190
        %v1255 = vmul.f32 %v994, %v1192
        %v1256 = vmul.f32 %v996, %v1192
        %v1257 = vmul.f32 %v998, %v1194
        %v1258 = vmul.f32 %v1000, %v1194
        %v1259 = vmul.f32 %v1002, %v1196
        %v1260 = vmul.f32 %v1004, %v1196
        %v1261 = vmul.f32 %v1006, %v1198
        %v1262 = vmul.f32 %v1008, %v1198
        %v1263 = vmul.f32 %v1010, %v1200
        %v1264 = vmul.f32 %v1012, %v1200
        %v1265 = vmul.f32 %v1014, %v1202
        %v1266 = vmul.f32 %v1016, %v1202
        %v1267 = vmul.f32 %v1018, %v1204
        %v1268 = vmul.f32 %v1020, %v1204
        %v1269 = vmul.f32 %v1022, %v1206
        %v1270 = vmul.f32 %v1024, %v1206
        %v1271 = vmul.f32 %v1026, %v1208
        %v1272 = vmul.f32 %v1028, %v1208
        %v1273 = vmul.f32 %v1030, %v1210
        %v1274 = vmul.f32 %v1032, %v1210
        %v1275 = vmul.f32 %v1034, %v1212
        %v1276 = vmul.f32 %v1036, %v1212
        %v1277 = vmul.f32 %v1038, %v1214
        %v1278 = vmul.f32 %v1040, %v1214
        %v1279 = vmul.f32 %v1042, %v1216
        %v1280 = vmul.f32 %v1044, %v1216
        %v1281 = vmul.f32 %v1046, %v1218
        %v1282 = vmul.f32 %v1048, %v1218
        %v1283 = vmul.f32 %v1050, %v1220
        %v1284 = vmul.f32 %v1052, %v1220
        %v1285 = vmul.f32 %v1054, %v1222
        %v1286 = vmul.f32 %v1056, %v1222
        %v1287 = vmul.f32 %v1058, %v1224
        %v1288 = vmul.f32 %v1060, %v1224
        %v1289 = vmul.f32 %v1062, %v1226
        %v1290 = vmul.f32 %v1064, %v1226
        %v1291 = vmul.f32 %v1066, %v1228
        %v1292 = vmul.f32 %v1068, %v1228
        %v1293 = vmax.f32 %v1229, %v1233
        %v1294 = vmax.f32 %v1231, %v1235
        %v1295 = vmax.f32 %v1293, %v1237
        %v1296 = vmax.f32 %v1294, %v1239
        %v1297 = vmax.f32 %v1295, %v1241
        %v1298 = vmax.f32 %v1296, %v1243
        %v1299 = vmax.f32 %v1297, %v1245
        %v1300 = vmax.f32 %v1298, %v1247
        %v1301 = vmax.f32 %v1299, %v1249
        %v1302 = vmax.f32 %v1300, %v1251
        %v1303 = vmax.f32 %v1301, %v1253
        %v1304 = vmax.f32 %v1302, %v1255
        %v1305 = vmax.f32 %v1303, %v1257
        %v1306 = vmax.f32 %v1304, %v1259
        %v1307 = vmax.f32 %v1305, %v1261
        %v1308 = vmax.f32 %v1306, %v1263
        %v1309 = vmax.f32 %v1307, %v1265
        %v1310 = vmax.f32 %v1308, %v1267
        %v1311 = vmax.f32 %v1309, %v1269
        %v1312 = vmax.f32 %v1310, %v1271
        %v1313 = vmax.f32 %v1311, %v1273
        %v1314 = vmax.f32 %v1312, %v1275
        %v1315 = vmax.f32 %v1313, %v1277
        %v1316 = vmax.f32 %v1314, %v1279
        %v1317 = vmax.f32 %v1315, %v1281
        %v1318 = vmax.f32 %v1316, %v1283
        %v1319 = vmax.f32 %v1317, %v1285
        %v1320 = vmax.f32 %v1318, %v1287
        %v1321 = vmax.f32 %v1319, %v1289
        %v1322 = vmax.f32 %v1320, %v1291
        %v1323 = vmax.f32 %v1321, %v1322
        %v1324 = vrot.slane %v1323, 4
        %v1325 = vmax.f32 %v1323, %v1324
        %v1326 = vrot.slane %v1325, 2
        %v1327 = vmax.f32 %v1325, %v1326
        %v1328 = vrot.slane %v1327, 1
        %v1329 = vmax.f32 %v1327, %v1328
        %v1330 = vmax.f32 %v1230, %v1234
        %v1331 = vmax.f32 %v1232, %v1236
        %v1332 = vmax.f32 %v1330, %v1238
        %v1333 = vmax.f32 %v1331, %v1240
        %v1334 = vmax.f32 %v1332, %v1242
        %v1335 = vmax.f32 %v1333, %v1244
        %v1336 = vmax.f32 %v1334, %v1246
        %v1337 = vmax.f32 %v1335, %v1248
        %v1338 = vmax.f32 %v1336, %v1250
        %v1339 = vmax.f32 %v1337, %v1252
        %v1340 = vmax.f32 %v1338, %v1254
        %v1341 = vmax.f32 %v1339, %v1256
        %v1342 = vmax.f32 %v1340, %v1258
        %v1343 = vmax.f32 %v1341, %v1260
        %v1344 = vmax.f32 %v1342, %v1262
        %v1345 = vmax.f32 %v1343, %v1264
        %v1346 = vmax.f32 %v1344, %v1266
        %v1347 = vmax.f32 %v1345, %v1268
        %v1348 = vmax.f32 %v1346, %v1270
        %v1349 = vmax.f32 %v1347, %v1272
        %v1350 = vmax.f32 %v1348, %v1274
        %v1351 = vmax.f32 %v1349, %v1276
        %v1352 = vmax.f32 %v1350, %v1278
        %v1353 = vmax.f32 %v1351, %v1280
        %v1354 = vmax.f32 %v1352, %v1282
        %v1355 = vmax.f32 %v1353, %v1284
        %v1356 = vmax.f32 %v1354, %v1286
        %v1357 = vmax.f32 %v1355, %v1288
        %v1358 = vmax.f32 %v1356, %v1290
        %v1359 = vmax.f32 %v1357, %v1292
        %v1360 = vmax.f32 %v1358, %v1359
        %v1361 = vrot.slane %v1360, 4
        %v1362 = vmax.f32 %v1360, %v1361
        %v1363 = vrot.slane %v1362, 2
        %v1364 = vmax.f32 %v1362, %v1363
        %v1365 = vrot.slane %v1364, 1
        %v1366 = vmax.f32 %v1364, %v1365
        %v1369 = vcombine.low %v1329, %v1366
        %v1371 = vunpack.c.l.s4 1966171168
        %v1372 = vunpack.c.0.s8 %v1371
        %v1373 = vlaneseq
        %v1374 = vshrl.u32 %v1373, 7
        %v1375 = vsub.s32 %v1372, %v1374
        %v1376 = vrot.slane %v1369, %v1375
        %v1378 = vunpack.c.l.s4 1966171168
        %v1379 = vunpack.c.0.s8 %v1378
        %v1380 = vlaneseq
        %v1381 = vshrl.u32 %v1380, 7
        %v1382 = vsub.s32 %v1379, %v1381
        %v1383 = vrot.slane %v1376, %v1382
        %v1385 = vlaneseq
        %vm1386 = vcmp.ge.s32.totalorder %v1385, 0
        %vm1387 = vcmp.lt.s32.totalorder %v1385, 256
        %vm1388 = vmand %vm1386, %vm1387
        %1389 = vst.msk [vmem:[%s202] sm:$0x3] %vm1388, %v1383
        %s1390 = sand.u32 %s96, 1
        %s1391 = scalar_lea.sflag [#allocation4], %s1390
        %s1392 = sand.u32 %s96, 1
        %s1393 = smul.addr %s1392, 2
        %s1394 = scalar_lea.vmem [#allocation7], %s1393
        // Predicated region
        $region37: #{tpu_custom_call.1} parent=27 // pred_check
          %p1395 = pneg %p106
        $region38: #{tpu_custom_call.1} parent=27 // pred_check_branch
          %1397 = sbr.rel (%p1395) target = $region40
        $region39: #{tpu_custom_call.1} parent=27 // pred_region
          %s1399 = ssub.s32 32, 32
          %1400 = vsyncadd %s1391, %s1399
          %s1401 = smul.addr %s25, 2
          %s1402 = smul.addr %s24, 2
          %s1403 = sadd.s32 %s1401, %s1402
          %s1404 = smul.addr %s1403, 16
          %s1405 = scalar_lea.hbm %s2, %s1404
          %s1407 = sshll.u32 %s1394, 4
          %s1408 = int_to_ptr.vmem [resolvable:$true] %s1407
          %1410 = dma.vmem_to_hbm [thread:$0]  %s1408, 32, %s1405, %s1391
        $region40: #{tpu_custom_call.1} parent=27 // pred_fallthru
          _
      $region28: #{tpu_custom_call.1} parent=5 // pred_fallthru
        _
      %p1411 = scmp.le.s32.totalorder 2, %s15
      // Predicated region
      $region41: #{tpu_custom_call.1} parent=5 // pred_check
        %p1412 = pneg %p1411
      $region42: #{tpu_custom_call.1} parent=5 // pred_check_branch
        %1414 = sbr.rel (%p1412) target = $region44
      $region43: #{tpu_custom_call.1} parent=5 // pred_region
        %s1415 = ssub.s32 %s15, 2
        // Predicated region
        $region45: #{tpu_custom_call.1} parent=43 // pred_check
          %p1416 = pneg %p112
        $region46: #{tpu_custom_call.1} parent=43 // pred_check_branch
          %1418 = sbr.rel (%p1416) target = $region48
        $region47: #{tpu_custom_call.1} parent=43 // pred_region
          %s1419 = sand.u32 %s97, 1
          %s1420 = scalar_lea.sflag [#allocation4], %s1419
          %s1421 = sand.u32 %s97, 1
          %s1422 = smul.addr %s1421, 2
          %s1423 = scalar_lea.vmem [#allocation7], %s1422
          %1424 = dma.done %s1420, 32
        $region48: #{tpu_custom_call.1} parent=43 // pred_fallthru
          _
      $region44: #{tpu_custom_call.1} parent=5 // pred_fallthru
        _
    $region6: #{tpu_custom_call.1} parent=1 // loop_footer
      %s19 = sadd.s32 1, %s15
    $region7: #{tpu_custom_call.1} parent=1 // loop_footer_branch
      %14 = sbr.rel target = $region3
    $region8: #{tpu_custom_call.1} parent=1 // loop_exit
      _
    %1425 = vsyncpa [#allocation3], 1
    %s1426 = scalar_lea.sflag [#allocation3], 1
    %1427 = vsyncpa %s1426, 1
    %1428 = vsyncpa [#allocation6], 1
    %1429 = vsyncpa [#allocation4], 1
    %s1430 = scalar_lea.sflag [#allocation4], 1
    %1431 = vsyncpa %s1430, 1

// kernel: tpu_custom_call.1
$region0: #{tpu_custom_call.1}
  #allocation0 [shape = 'u32[]', space=smem, size = 0x4, offset = 0x4, fixed_abs, tag = 'smem constant byte address 0x4 - core index']
  #allocation1 [shape = 'u32[144,128]{1,0:T(1,128)}', space=vmem, size = 0x12000, scoped, tag = 'internal scratch']
  %s0 = inlined_call_operand.hbm [shape: f32[2,256,128], index: 0, kind: input, shape index: {}]
  %s1 = inlined_call_operand.hbm [shape: f32[2,128,256], index: 1, kind: input, shape index: {}]
  %s2 = inlined_call_operand.hbm [shape: f32[2,1,1,256], index: 2, kind: output, shape index: {}]
  %s3 = sld [smem:[#allocation0]]
  $region49: #{tpu_custom_call.1} parent=0
    _
  %s5 = ssub.s32 1, %s3
  %s6 = scalar_select 0, %s5, %s3
  $region1: #{tpu_custom_call.1} parent=0
    #allocation2 [shape = 'u8[262144]{0}', space=vmem, size = 0x40000, scoped, tag = 'input window, operand 0']
    #allocation3 [shape = 's32[2]{0}', space=sflag, size = 0x8, scoped, tag = 'scoped memory for tpu_custom_call.1']
    #allocation4 [shape = 's32[2]{0}', space=sflag, size = 0x8, scoped, tag = 'scoped memory for tpu_custom_call.1']
    #allocation5 [shape = 'u8[262144]{0}', space=vmem, size = 0x40000, scoped, tag = 'input window, operand 1']
    #allocation6 [shape = 's32[2]{0}', space=sflag, size = 0x8, scoped, tag = 'scoped memory for tpu_custom_call.1']
    #allocation7 [shape = 'u8[2048]{0}', space=vmem, size = 0x800, scoped, tag = 'output window, operand 0']
    %7 = vsyncpa [#allocation3], 0
    %s8 = scalar_lea.sflag [#allocation3], 1
    %9 = vsyncpa %s8, 0
    %10 = vsyncpa [#allocation6], 0
    %s11 = scalar_lea.sflag [#allocation6], 1
    %12 = vsyncpa %s11, 0
    %13 = vsyncpa [#allocation4], 0
    %s14 = scalar_lea.sflag [#allocation4], 1
    %15 = vsyncpa %s14, 0
    loop: start=0, step=1, limit=4
    $region2: #{tpu_custom_call.1} parent=1 // loop_pre_header
      _
    $region3: #{tpu_custom_call.1} parent=1 // loop_header
      %s17 = sphi 0, %s21
      %p18 = scmp.ge.s32.totalorder %s17, 4
      %s24 = sphi 0, %s36
      %s25 = sphi 0, %s32
      %s26 = sphi 0, %s24
      %s27 = sphi 0, %s25
      %s28 = sphi 0, %s26
      %s29 = sphi 0, %s27
      %s41 = sphi 0, %s43
      %s44 = sphi 0, %s41
      %s45 = sphi 0, %s44
      %s61 = sphi 0, %s45
      %s67 = sphi 0, %s69
      %s70 = sphi 0, %s67
      %s71 = sphi 0, %s70
      %s87 = sphi 0, %s71
      %s95 = sphi 0, %s97
      %s98 = sphi 0, %s95
      %s99 = sphi 0, %s98
      %s115 = sphi 0, %s99
    $region4: #{tpu_custom_call.1} parent=1 // loop_header_branch
      %20 = sbr.rel (%p18) target = $region8
    $region5: #{tpu_custom_call.1} parent=1 // loop_body
      %s22 = ssub.s32 %s17, 1
      %s23 = ssub.s32 %s17, 2
      %s30 = sadd.s32 1, %s25
      %p31 = scmp.ge.s32.totalorder %s30, 1
      %s32 = scalar_select %p31, 0, %s30
      %s33 = sadd.s32 1, %s24
      %s34 = scalar_select %p31, %s33, %s24
      %p35 = scmp.ge.s32.totalorder %s34, 2
      %s36 = scalar_select %p35, 0, %s34
      %s37 = ssub.s32 %s24, %s36
      %s38 = ssub.s32 %s25, %s32
      %s39 = sor.u32 %s37, %s38
      %p40 = scmp.eq.s32.totalorder %s39, 0
      %s42 = sadd.s32 %s41, 1
      %s43 = scalar_select %p40, %s41, %s42
      %p46 = pneg %p40
      %p47 = scmp.eq.s32.totalorder %s17, 1
      %p48 = por %p46, %p47
      %p49 = scmp.ne.s32.totalorder %s41, %s44
      %p50 = scmp.eq.s32.totalorder %s17, 0
      %p51 = por %p49, %p50
      %p52 = scmp.ne.s32.totalorder %s41, %s44
      %p53 = scmp.eq.s32.totalorder %s22, 1
      %p54 = por %p52, %p53
      %p55 = scmp.ne.s32.totalorder %s44, %s45
      %p56 = scmp.eq.s32.totalorder %s22, 0
      %p57 = por %p55, %p56
      %p58 = scmp.ne.s32.totalorder %s44, %s45
      %p59 = scmp.eq.s32.totalorder %s23, 1
      %p60 = por %p58, %p59
      %p62 = scmp.ne.s32.totalorder %s45, %s61
      %p63 = scmp.eq.s32.totalorder %s23, 0
      %p64 = por %p62, %p63
      %s65 = ssub.s32 %s24, %s36
      %p66 = scmp.eq.s32.totalorder %s65, 0
      %s68 = sadd.s32 %s67, 1
      %s69 = scalar_select %p66, %s67, %s68
      %p72 = pneg %p66
      %p73 = scmp.eq.s32.totalorder %s17, 1
      %p74 = por %p72, %p73
      %p75 = scmp.ne.s32.totalorder %s67, %s70
      %p76 = scmp.eq.s32.totalorder %s17, 0
      %p77 = por %p75, %p76
      %p78 = scmp.ne.s32.totalorder %s67, %s70
      %p79 = scmp.eq.s32.totalorder %s22, 1
      %p80 = por %p78, %p79
      %p81 = scmp.ne.s32.totalorder %s70, %s71
      %p82 = scmp.eq.s32.totalorder %s22, 0
      %p83 = por %p81, %p82
      %p84 = scmp.ne.s32.totalorder %s70, %s71
      %p85 = scmp.eq.s32.totalorder %s23, 1
      %p86 = por %p84, %p85
      %p88 = scmp.ne.s32.totalorder %s71, %s87
      %p89 = scmp.eq.s32.totalorder %s23, 0
      %p90 = por %p88, %p89
      %s91 = ssub.s32 %s24, %s36
      %s92 = ssub.s32 %s25, %s32
      %s93 = sor.u32 %s91, %s92
      %p94 = scmp.eq.s32.totalorder %s93, 0
      %s96 = sadd.s32 %s95, 1
      %s97 = scalar_select %p94, %s95, %s96
      %p100 = pneg %p94
      %p101 = scmp.eq.s32.totalorder %s17, 1
      %p102 = por %p100, %p101
      %p103 = scmp.ne.s32.totalorder %s95, %s98
      %p104 = scmp.eq.s32.totalorder %s17, 0
      %p105 = por %p103, %p104
      %p106 = scmp.ne.s32.totalorder %s95, %s98
      %p107 = scmp.eq.s32.totalorder %s22, 1
      %p108 = por %p106, %p107
      %p109 = scmp.ne.s32.totalorder %s98, %s99
      %p110 = scmp.eq.s32.totalorder %s22, 0
      %p111 = por %p109, %p110
      %p112 = scmp.ne.s32.totalorder %s98, %s99
      %p113 = scmp.eq.s32.totalorder %s23, 1
      %p114 = por %p112, %p113
      %p116 = scmp.ne.s32.totalorder %s99, %s115
      %p117 = scmp.eq.s32.totalorder %s23, 0
      %p118 = por %p116, %p117
      %p119 = scmp.le.s32.totalorder 1, %s17
      %p120 = scmp.lt.s32.totalorder %s17, 3
      %p121 = pnand %p119, %p120
      %p122 = pneg %p121
      // Predicated region
      $region9: #{tpu_custom_call.1} parent=5 // pred_check
        _
      $region10: #{tpu_custom_call.1} parent=5 // pred_check_branch
        %124 = sbr.rel (%p121) target = $region12
      $region11: #{tpu_custom_call.1} parent=5 // pred_region
        %s125 = ssub.s32 %s17, 1
      $region12: #{tpu_custom_call.1} parent=5 // pred_fallthru
        _
      %p126 = scmp.lt.s32.totalorder %s17, 2
      // Predicated region
      $region13: #{tpu_custom_call.1} parent=5 // pred_check
        %p127 = pneg %p126
      $region14: #{tpu_custom_call.1} parent=5 // pred_check_branch
        %129 = sbr.rel (%p127) target = $region16
      $region15: #{tpu_custom_call.1} parent=5 // pred_region
        // Predicated region
        $region17: #{tpu_custom_call.1} parent=15 // pred_check
          %p130 = pneg %p51
        $region18: #{tpu_custom_call.1} parent=15 // pred_check_branch
          %132 = sbr.rel (%p130) target = $region20
        $region19: #{tpu_custom_call.1} parent=15 // pred_region
          %s133 = sand.u32 %s41, 1
          %s134 = scalar_lea.sflag [#allocation3], %s133
          %s135 = sand.u32 %s41, 1
          %s136 = smul.addr %s135, 256
          %s137 = scalar_lea.vmem [#allocation2], %s136
          %s138 = smul.u32 32, %s25
          %s140 = ssub.s32 4096, 4096
          %141 = vsyncadd %s134, %s140
          %s142 = smul.addr %s24, 32
          %s143 = sadd.s32 %s138, %s142
          %s144 = smul.addr %s143, 128
          %s145 = scalar_lea.hbm %s0, %s144
          %s146 = sshll.u32 %s137, 4
          %s147 = int_to_ptr.vmem [resolvable:$true] %s146
          %152 = dma.hbm_to_vmem [thread:$0]  %s145, 4096, %s147, %s134, 128, 128, 8
        $region20: #{tpu_custom_call.1} parent=15 // pred_fallthru
          _
        // Predicated region
        $region21: #{tpu_custom_call.1} parent=15 // pred_check
          %p153 = pneg %p77
        $region22: #{tpu_custom_call.1} parent=15 // pred_check_branch
          %155 = sbr.rel (%p153) target = $region24
        $region23: #{tpu_custom_call.1} parent=15 // pred_region
          %s156 = sand.u32 %s67, 1
          %s157 = scalar_lea.sflag [#allocation6], %s156
          %s158 = sand.u32 %s67, 1
          %s159 = smul.addr %s158, 256
          %s160 = scalar_lea.vmem [#allocation5], %s159
          %s162 = ssub.s32 4096, 4096
          %163 = vsyncadd %s157, %s162
          %s164 = smul.addr %s24, 32
          %s165 = smul.addr %s164, 128
          %s166 = scalar_lea.hbm %s1, %s165
          %s167 = sshll.u32 %s160, 4
          %s168 = int_to_ptr.vmem [resolvable:$true] %s167
          %173 = dma.hbm_to_vmem [thread:$0]  %s166, 4096, %s168, %s157, 256, 256, 16
        $region24: #{tpu_custom_call.1} parent=15 // pred_fallthru
          _
      $region16: #{tpu_custom_call.1} parent=5 // pred_fallthru
        _
      %p174 = scmp.le.s32.totalorder 1, %s17
      %p175 = scmp.lt.s32.totalorder %s17, 3
      %p176 = pnand %p174, %p175
      %p177 = pneg %p176
      // Predicated region
      $region25: #{tpu_custom_call.1} parent=5 // pred_check
        _
      $region26: #{tpu_custom_call.1} parent=5 // pred_check_branch
        %179 = sbr.rel (%p176) target = $region28
      $region27: #{tpu_custom_call.1} parent=5 // pred_region
        %s180 = ssub.s32 %s17, 1
        %s181 = sand.u32 %s44, 1
        %s182 = scalar_lea.sflag [#allocation3], %s181
        %s183 = sand.u32 %s44, 1
        %s184 = smul.addr %s183, 256
        %s185 = scalar_lea.vmem [#allocation2], %s184
        // Predicated region
        $region29: #{tpu_custom_call.1} parent=27 // pred_check
          %p186 = pneg %p57
        $region30: #{tpu_custom_call.1} parent=27 // pred_check_branch
          %188 = sbr.rel (%p186) target = $region32
        $region31: #{tpu_custom_call.1} parent=27 // pred_region
          %189 = dma.done %s182, 4096
        $region32: #{tpu_custom_call.1} parent=27 // pred_fallthru
          _
        %s190 = sand.u32 %s70, 1
        %s191 = scalar_lea.sflag [#allocation6], %s190
        %s192 = sand.u32 %s70, 1
        %s193 = smul.addr %s192, 256
        %s194 = scalar_lea.vmem [#allocation5], %s193
        // Predicated region
        $region33: #{tpu_custom_call.1} parent=27 // pred_check
          %p195 = pneg %p83
        $region34: #{tpu_custom_call.1} parent=27 // pred_check_branch
          %197 = sbr.rel (%p195) target = $region36
        $region35: #{tpu_custom_call.1} parent=27 // pred_region
          %198 = dma.done %s191, 4096
        $region36: #{tpu_custom_call.1} parent=27 // pred_fallthru
          _
        %s199 = sand.u32 %s44, 1
        %s200 = scalar_lea.sflag [#allocation3], %s199
        %s201 = sand.u32 %s44, 1
        %s202 = smul.addr %s201, 256
        %s203 = scalar_lea.vmem [#allocation2], %s202
        %p204 = pneg %p57
        %p205 = pneg %p54
        %s206 = sand.u32 %s70, 1
        %s207 = scalar_lea.sflag [#allocation6], %s206
        %s208 = sand.u32 %s70, 1
        %s209 = smul.addr %s208, 256
        %s210 = scalar_lea.vmem [#allocation5], %s209
        %p211 = pneg %p83
        %p212 = pneg %p80
        %p213 = pneg %p111
        %p214 = pneg %p108
        %s215 = sand.u32 %s98, 1
        %s216 = scalar_lea.sflag [#allocation4], %s215
        %s217 = sand.u32 %s98, 1
        %s218 = smul.addr %s217, 2
        %s219 = scalar_lea.vmem [#allocation7], %s218
        %s220 = smul.u32 32, %s27
        %v221 = vld [vmem:[%s185] sm:$0xff]
        %v222 = vld [vmem:[%s185 + $0x8] sm:$0xff]
        %v223 = vld [vmem:[%s185 + $0x10] sm:$0xff]
        %v224 = vld [vmem:[%s185 + $0x18] sm:$0xff]
        %v225 = vld [vmem:[%s185 + $0x20] sm:$0xff]
        %v226 = vld [vmem:[%s185 + $0x28] sm:$0xff]
        %v227 = vld [vmem:[%s185 + $0x30] sm:$0xff]
        %v228 = vld [vmem:[%s185 + $0x38] sm:$0xff]
        %v229 = vld [vmem:[%s185 + $0x40] sm:$0xff]
        %v230 = vld [vmem:[%s185 + $0x48] sm:$0xff]
        %v231 = vld [vmem:[%s185 + $0x50] sm:$0xff]
        %v232 = vld [vmem:[%s185 + $0x58] sm:$0xff]
        %v233 = vld [vmem:[%s185 + $0x60] sm:$0xff]
        %v234 = vld [vmem:[%s185 + $0x68] sm:$0xff]
        %v235 = vld [vmem:[%s185 + $0x70] sm:$0xff]
        %v236 = vld [vmem:[%s185 + $0x78] sm:$0xff]
        %v237 = vld [vmem:[%s185 + $0x80] sm:$0xff]
        %v238 = vld [vmem:[%s185 + $0x88] sm:$0xff]
        %v239 = vld [vmem:[%s185 + $0x90] sm:$0xff]
        %v240 = vld [vmem:[%s185 + $0x98] sm:$0xff]
        %v241 = vld [vmem:[%s185 + $0xa0] sm:$0xff]
        %v242 = vld [vmem:[%s185 + $0xa8] sm:$0xff]
        %v243 = vld [vmem:[%s185 + $0xb0] sm:$0xff]
        %v244 = vld [vmem:[%s185 + $0xb8] sm:$0xff]
        %v245 = vld [vmem:[%s185 + $0xc0] sm:$0xff]
        %v246 = vld [vmem:[%s185 + $0xc8] sm:$0xff]
        %v247 = vld [vmem:[%s185 + $0xd0] sm:$0xff]
        %v248 = vld [vmem:[%s185 + $0xd8] sm:$0xff]
        %v249 = vld [vmem:[%s185 + $0xe0] sm:$0xff]
        %v250 = vld [vmem:[%s185 + $0xe8] sm:$0xff]
        %v251 = vld [vmem:[%s185 + $0xf0] sm:$0xff]
        %v252 = vld [vmem:[%s185 + $0xf8] sm:$0xff]
        %v253 = vld [vmem:[%s194] sm:$0xff]
        %v254 = vld [vmem:[%s194 + $0x8] sm:$0xff]
        %v255 = vld [vmem:[%s194 + $0x10] sm:$0xff]
        %v256 = vld [vmem:[%s194 + $0x18] sm:$0xff]
        %v257 = vld [vmem:[%s194 + $0x20] sm:$0xff]
        %v258 = vld [vmem:[%s194 + $0x28] sm:$0xff]
        %v259 = vld [vmem:[%s194 + $0x30] sm:$0xff]
        %v260 = vld [vmem:[%s194 + $0x38] sm:$0xff]
        %v261 = vld [vmem:[%s194 + $0x40] sm:$0xff]
        %v262 = vld [vmem:[%s194 + $0x48] sm:$0xff]
        %v263 = vld [vmem:[%s194 + $0x50] sm:$0xff]
        %v264 = vld [vmem:[%s194 + $0x58] sm:$0xff]
        %v265 = vld [vmem:[%s194 + $0x60] sm:$0xff]
        %v266 = vld [vmem:[%s194 + $0x68] sm:$0xff]
        %v267 = vld [vmem:[%s194 + $0x70] sm:$0xff]
        %v268 = vld [vmem:[%s194 + $0x78] sm:$0xff]
        %v269 = vld [vmem:[%s194 + $0x80] sm:$0xff]
        %v270 = vld [vmem:[%s194 + $0x88] sm:$0xff]
        %v271 = vld [vmem:[%s194 + $0x90] sm:$0xff]
        %v272 = vld [vmem:[%s194 + $0x98] sm:$0xff]
        %v273 = vld [vmem:[%s194 + $0xa0] sm:$0xff]
        %v274 = vld [vmem:[%s194 + $0xa8] sm:$0xff]
        %v275 = vld [vmem:[%s194 + $0xb0] sm:$0xff]
        %v276 = vld [vmem:[%s194 + $0xb8] sm:$0xff]
        %v277 = vld [vmem:[%s194 + $0xc0] sm:$0xff]
        %v278 = vld [vmem:[%s194 + $0xc8] sm:$0xff]
        %v279 = vld [vmem:[%s194 + $0xd0] sm:$0xff]
        %v280 = vld [vmem:[%s194 + $0xd8] sm:$0xff]
        %v281 = vld [vmem:[%s194 + $0xe0] sm:$0xff]
        %v282 = vld [vmem:[%s194 + $0xe8] sm:$0xff]
        %v283 = vld [vmem:[%s194 + $0xf0] sm:$0xff]
        %v284 = vld [vmem:[%s194 + $0xf8] sm:$0xff]
        %285 = vmatprep.subr.mxu0 %v284
        %286 = vmatpush1.msra.mxu0 %v283
        %287 = vmatprep.subr.mxu0 %v282
        %288 = vmatpush1.msra.mxu0 %v281
        %289 = vmatprep.subr.mxu0 %v280
        %290 = vmatpush1.msra.mxu0 %v279
        %291 = vmatprep.subr.mxu0 %v278
        %292 = vmatpush1.msra.mxu0 %v277
        %293 = vmatprep.subr.mxu0 %v276
        %294 = vmatpush1.msra.mxu0 %v275
        %295 = vmatprep.subr.mxu0 %v274
        %296 = vmatpush1.msra.mxu0 %v273
        %297 = vmatprep.subr.mxu0 %v272
        %298 = vmatpush1.msra.mxu0 %v271
        %299 = vmatprep.subr.mxu0 %v270
        %300 = vmatpush1.msra.mxu0 %v269
        %301 = vmatprep.subr.mxu0 %v268
        %302 = vmatpush1.msra.mxu0 %v267
        %303 = vmatprep.subr.mxu0 %v266
        %304 = vmatpush1.msra.mxu0 %v265
        %305 = vmatprep.subr.mxu0 %v264
        %306 = vmatpush1.msra.mxu0 %v263
        %307 = vmatprep.subr.mxu0 %v262
        %308 = vmatpush1.msra.mxu0 %v261
        %309 = vmatprep.subr.mxu0 %v260
        %310 = vmatpush1.msra.mxu0 %v259
        %311 = vmatprep.subr.mxu0 %v258
        %312 = vmatpush1.msra.mxu0 %v257
        %313 = vmatprep.subr.mxu0 %v256
        %314 = vmatpush1.msra.mxu0 %v255
        %315 = vmatprep.subr.mxu0 %v254
        %316 = vmatpush1.msra.mxu0 %v253
        %317 = vmatprep.subr.mxu0 0.0
        %318 = vmatpush2.msra.mxu0 0.0
        %319 = vmatprep.subr.mxu0 0.0
        %320 = vmatpush2.msra.mxu0 0.0
        %321 = vmatprep.subr.mxu0 0.0
        %322 = vmatpush2.msra.mxu0 0.0
        %323 = vmatprep.subr.mxu0 0.0
        %324 = vmatpush2.msra.mxu0 0.0
        %325 = vmatprep.subr.mxu0 0.0
        %326 = vmatpush2.msra.mxu0 0.0
        %327 = vmatprep.subr.mxu0 0.0
        %328 = vmatpush2.msra.mxu0 0.0
        %329 = vmatprep.subr.mxu0 0.0
        %330 = vmatpush2.msra.mxu0 0.0
        %331 = vmatprep.subr.mxu0 0.0
        %332 = vmatpush2.msra.mxu0 0.0
        %333 = vmatprep.subr.mxu0 0.0
        %334 = vmatpush2.msra.mxu0 0.0
        %335 = vmatprep.subr.mxu0 0.0
        %336 = vmatpush2.msra.mxu0 0.0
        %337 = vmatprep.subr.mxu0 0.0
        %338 = vmatpush2.msra.mxu0 0.0
        %339 = vmatprep.subr.mxu0 0.0
        %340 = vmatpush2.msra.mxu0 0.0
        %341 = vmatprep.subr.mxu0 0.0
        %342 = vmatpush2.msra.mxu0 0.0
        %343 = vmatprep.subr.mxu0 0.0
        %344 = vmatpush2.msra.mxu0 0.0
        %345 = vmatprep.subr.mxu0 0.0
        %346 = vmatpush2.msra.mxu0 0.0
        %347 = vmatprep.subr.mxu0 0.0
        %348 = vmatpush2.msra.mxu0 0.0
        %349 = vmatprep.mubr.f32.mxu0 0.0
        %350 = vmatmul.mubr.f32.gmra.mxu0 %v221
        %v351 = vpop.f32.mrf.mxu0
        %v352 = vadd.f32 0.0, %v351
        %v353 = vpop.f32.mrf.mxu0
        %v354 = vadd.f32 0.0, %v353
        %355 = vmatprep.mubr.f32.mxu0 0.0
        %356 = vmatmul.mubr.f32.gmra.mxu0 %v222
        %v357 = vpop.f32.mrf.mxu0
        %v358 = vadd.f32 0.0, %v357
        %v359 = vpop.f32.mrf.mxu0
        %v360 = vadd.f32 0.0, %v359
        %361 = vmatprep.mubr.f32.mxu0 0.0
        %362 = vmatmul.mubr.f32.gmra.mxu0 %v223
        %v363 = vpop.f32.mrf.mxu0
        %v364 = vadd.f32 0.0, %v363
        %v365 = vpop.f32.mrf.mxu0
        %v366 = vadd.f32 0.0, %v365
        %367 = vmatprep.mubr.f32.mxu0 0.0
        %368 = vmatmul.mubr.f32.gmra.mxu0 %v224
        %v369 = vpop.f32.mrf.mxu0
        %v370 = vadd.f32 0.0, %v369
        %v371 = vpop.f32.mrf.mxu0
        %v372 = vadd.f32 0.0, %v371
        %373 = vmatprep.mubr.f32.mxu0 0.0
        %374 = vmatmul.mubr.f32.gmra.mxu0 %v225
        %v375 = vpop.f32.mrf.mxu0
        %v376 = vadd.f32 0.0, %v375
        %v377 = vpop.f32.mrf.mxu0
        %v378 = vadd.f32 0.0, %v377
        %379 = vmatprep.mubr.f32.mxu0 0.0
        %380 = vmatmul.mubr.f32.gmra.mxu0 %v226
        %v381 = vpop.f32.mrf.mxu0
        %v382 = vadd.f32 0.0, %v381
        %v383 = vpop.f32.mrf.mxu0
        %v384 = vadd.f32 0.0, %v383
        %385 = vmatprep.mubr.f32.mxu0 0.0
        %386 = vmatmul.mubr.f32.gmra.mxu0 %v227
        %v387 = vpop.f32.mrf.mxu0
        %v388 = vadd.f32 0.0, %v387
        %v389 = vpop.f32.mrf.mxu0
        %v390 = vadd.f32 0.0, %v389
        %391 = vmatprep.mubr.f32.mxu0 0.0
        %392 = vmatmul.mubr.f32.gmra.mxu0 %v228
        %v393 = vpop.f32.mrf.mxu0
        %v394 = vadd.f32 0.0, %v393
        %v395 = vpop.f32.mrf.mxu0
        %v396 = vadd.f32 0.0, %v395
        %397 = vmatprep.mubr.f32.mxu0 0.0
        %398 = vmatmul.mubr.f32.gmra.mxu0 %v229
        %v399 = vpop.f32.mrf.mxu0
        %v400 = vadd.f32 0.0, %v399
        %v401 = vpop.f32.mrf.mxu0
        %v402 = vadd.f32 0.0, %v401
        %403 = vmatprep.mubr.f32.mxu0 0.0
        %404 = vmatmul.mubr.f32.gmra.mxu0 %v230
        %v405 = vpop.f32.mrf.mxu0
        %v406 = vadd.f32 0.0, %v405
        %v407 = vpop.f32.mrf.mxu0
        %v408 = vadd.f32 0.0, %v407
        %409 = vmatprep.mubr.f32.mxu0 0.0
        %410 = vmatmul.mubr.f32.gmra.mxu0 %v231
        %v411 = vpop.f32.mrf.mxu0
        %v412 = vadd.f32 0.0, %v411
        %v413 = vpop.f32.mrf.mxu0
        %v414 = vadd.f32 0.0, %v413
        %415 = vmatprep.mubr.f32.mxu0 0.0
        %416 = vmatmul.mubr.f32.gmra.mxu0 %v232
        %v417 = vpop.f32.mrf.mxu0
        %v418 = vadd.f32 0.0, %v417
        %v419 = vpop.f32.mrf.mxu0
        %v420 = vadd.f32 0.0, %v419
        %421 = vmatprep.mubr.f32.mxu0 0.0
        %422 = vmatmul.mubr.f32.gmra.mxu0 %v233
        %v423 = vpop.f32.mrf.mxu0
        %v424 = vadd.f32 0.0, %v423
        %v425 = vpop.f32.mrf.mxu0
        %v426 = vadd.f32 0.0, %v425
        %427 = vmatprep.mubr.f32.mxu0 0.0
        %428 = vmatmul.mubr.f32.gmra.mxu0 %v234
        %v429 = vpop.f32.mrf.mxu0
        %v430 = vadd.f32 0.0, %v429
        %v431 = vpop.f32.mrf.mxu0
        %v432 = vadd.f32 0.0, %v431
        %433 = vmatprep.mubr.f32.mxu0 0.0
        %434 = vmatmul.mubr.f32.gmra.mxu0 %v235
        %v435 = vpop.f32.mrf.mxu0
        %v436 = vadd.f32 0.0, %v435
        %v437 = vpop.f32.mrf.mxu0
        %v438 = vadd.f32 0.0, %v437
        %439 = vmatprep.mubr.f32.mxu0 0.0
        %440 = vmatmul.mubr.f32.gmra.mxu0 %v236
        %v441 = vpop.f32.mrf.mxu0
        %v442 = vadd.f32 0.0, %v441
        %v443 = vpop.f32.mrf.mxu0
        %v444 = vadd.f32 0.0, %v443
        %445 = vmatprep.mubr.f32.mxu0 0.0
        %446 = vmatmul.mubr.f32.gmra.mxu0 %v237
        %v447 = vpop.f32.mrf.mxu0
        %v448 = vadd.f32 0.0, %v447
        %v449 = vpop.f32.mrf.mxu0
        %v450 = vadd.f32 0.0, %v449
        %451 = vmatprep.mubr.f32.mxu0 0.0
        %452 = vmatmul.mubr.f32.gmra.mxu0 %v238
        %v453 = vpop.f32.mrf.mxu0
        %v454 = vadd.f32 0.0, %v453
        %v455 = vpop.f32.mrf.mxu0
        %v456 = vadd.f32 0.0, %v455
        %457 = vmatprep.mubr.f32.mxu0 0.0
        %458 = vmatmul.mubr.f32.gmra.mxu0 %v239
        %v459 = vpop.f32.mrf.mxu0
        %v460 = vadd.f32 0.0, %v459
        %v461 = vpop.f32.mrf.mxu0
        %v462 = vadd.f32 0.0, %v461
        %463 = vmatprep.mubr.f32.mxu0 0.0
        %464 = vmatmul.mubr.f32.gmra.mxu0 %v240
        %v465 = vpop.f32.mrf.mxu0
        %v466 = vadd.f32 0.0, %v465
        %v467 = vpop.f32.mrf.mxu0
        %v468 = vadd.f32 0.0, %v467
        %469 = vmatprep.mubr.f32.mxu0 0.0
        %470 = vmatmul.mubr.f32.gmra.mxu0 %v241
        %v471 = vpop.f32.mrf.mxu0
        %v472 = vadd.f32 0.0, %v471
        %v473 = vpop.f32.mrf.mxu0
        %v474 = vadd.f32 0.0, %v473
        %475 = vmatprep.mubr.f32.mxu0 0.0
        %476 = vmatmul.mubr.f32.gmra.mxu0 %v242
        %v477 = vpop.f32.mrf.mxu0
        %v478 = vadd.f32 0.0, %v477
        %v479 = vpop.f32.mrf.mxu0
        %v480 = vadd.f32 0.0, %v479
        %481 = vmatprep.mubr.f32.mxu0 0.0
        %482 = vmatmul.mubr.f32.gmra.mxu0 %v243
        %v483 = vpop.f32.mrf.mxu0
        %v484 = vadd.f32 0.0, %v483
        %v485 = vpop.f32.mrf.mxu0
        %v486 = vadd.f32 0.0, %v485
        %487 = vmatprep.mubr.f32.mxu0 0.0
        %488 = vmatmul.mubr.f32.gmra.mxu0 %v244
        %v489 = vpop.f32.mrf.mxu0
        %v490 = vadd.f32 0.0, %v489
        %v491 = vpop.f32.mrf.mxu0
        %v492 = vadd.f32 0.0, %v491
        %493 = vmatprep.mubr.f32.mxu0 0.0
        %494 = vmatmul.mubr.f32.gmra.mxu0 %v245
        %v495 = vpop.f32.mrf.mxu0
        %v496 = vadd.f32 0.0, %v495
        %v497 = vpop.f32.mrf.mxu0
        %v498 = vadd.f32 0.0, %v497
        %499 = vmatprep.mubr.f32.mxu0 0.0
        %500 = vmatmul.mubr.f32.gmra.mxu0 %v246
        %v501 = vpop.f32.mrf.mxu0
        %v502 = vadd.f32 0.0, %v501
        %v503 = vpop.f32.mrf.mxu0
        %v504 = vadd.f32 0.0, %v503
        %505 = vmatprep.mubr.f32.mxu0 0.0
        %506 = vmatmul.mubr.f32.gmra.mxu0 %v247
        %v507 = vpop.f32.mrf.mxu0
        %v508 = vadd.f32 0.0, %v507
        %v509 = vpop.f32.mrf.mxu0
        %v510 = vadd.f32 0.0, %v509
        %511 = vmatprep.mubr.f32.mxu0 0.0
        %512 = vmatmul.mubr.f32.gmra.mxu0 %v248
        %v513 = vpop.f32.mrf.mxu0
        %v514 = vadd.f32 0.0, %v513
        %v515 = vpop.f32.mrf.mxu0
        %v516 = vadd.f32 0.0, %v515
        %517 = vmatprep.mubr.f32.mxu0 0.0
        %518 = vmatmul.mubr.f32.gmra.mxu0 %v249
        %v519 = vpop.f32.mrf.mxu0
        %v520 = vadd.f32 0.0, %v519
        %v521 = vpop.f32.mrf.mxu0
        %v522 = vadd.f32 0.0, %v521
        %523 = vmatprep.mubr.f32.mxu0 0.0
        %524 = vmatmul.mubr.f32.gmra.mxu0 %v250
        %v525 = vpop.f32.mrf.mxu0
        %v526 = vadd.f32 0.0, %v525
        %v527 = vpop.f32.mrf.mxu0
        %v528 = vadd.f32 0.0, %v527
        %529 = vmatprep.mubr.f32.mxu0 0.0
        %530 = vmatmul.mubr.f32.gmra.mxu0 %v251
        %v531 = vpop.f32.mrf.mxu0
        %v532 = vadd.f32 0.0, %v531
        %v533 = vpop.f32.mrf.mxu0
        %v534 = vadd.f32 0.0, %v533
        %535 = vmatprep.mubr.f32.mxu0 0.0
        %536 = vmatmul.mubr.f32.gmra.mxu0 %v252
        %v537 = vpop.f32.mrf.mxu0
        %v538 = vadd.f32 0.0, %v537
        %v539 = vpop.f32.mrf.mxu0
        %v540 = vadd.f32 0.0, %v539
        %541 = vdwg.mxu0
        %v542 = vmax.f32 %v352, %v354
        %543 = vmax.xlane.f32.xlu0 %v542
        %v544 = vpop.xlane.xlu0 %543
        %v545 = vmax.f32 %v358, %v360
        %546 = vmax.xlane.f32.xlu0 %v545
        %v547 = vpop.xlane.xlu0 %546
        %v548 = vmax.f32 %v364, %v366
        %549 = vmax.xlane.f32.xlu0 %v548
        %v550 = vpop.xlane.xlu0 %549
        %v551 = vmax.f32 %v370, %v372
        %552 = vmax.xlane.f32.xlu0 %v551
        %v553 = vpop.xlane.xlu0 %552
        %v554 = vmax.f32 %v376, %v378
        %555 = vmax.xlane.f32.xlu0 %v554
        %v556 = vpop.xlane.xlu0 %555
        %v557 = vmax.f32 %v382, %v384
        %558 = vmax.xlane.f32.xlu0 %v557
        %v559 = vpop.xlane.xlu0 %558
        %v560 = vmax.f32 %v388, %v390
        %561 = vmax.xlane.f32.xlu0 %v560
        %v562 = vpop.xlane.xlu0 %561
        %v563 = vmax.f32 %v394, %v396
        %564 = vmax.xlane.f32.xlu0 %v563
        %v565 = vpop.xlane.xlu0 %564
        %v566 = vmax.f32 %v400, %v402
        %567 = vmax.xlane.f32.xlu0 %v566
        %v568 = vpop.xlane.xlu0 %567
        %v569 = vmax.f32 %v406, %v408
        %570 = vmax.xlane.f32.xlu0 %v569
        %v571 = vpop.xlane.xlu0 %570
        %v572 = vmax.f32 %v412, %v414
        %573 = vmax.xlane.f32.xlu0 %v572
        %v574 = vpop.xlane.xlu0 %573
        %v575 = vmax.f32 %v418, %v420
        %576 = vmax.xlane.f32.xlu0 %v575
        %v577 = vpop.xlane.xlu0 %576
        %v578 = vmax.f32 %v424, %v426
        %579 = vmax.xlane.f32.xlu0 %v578
        %v580 = vpop.xlane.xlu0 %579
        %v581 = vmax.f32 %v430, %v432
        %582 = vmax.xlane.f32.xlu0 %v581
        %v583 = vpop.xlane.xlu0 %582
        %v584 = vmax.f32 %v436, %v438
        %585 = vmax.xlane.f32.xlu0 %v584
        %v586 = vpop.xlane.xlu0 %585
        %v587 = vmax.f32 %v442, %v444
        %588 = vmax.xlane.f32.xlu0 %v587
        %v589 = vpop.xlane.xlu0 %588
        %v590 = vmax.f32 %v448, %v450
        %591 = vmax.xlane.f32.xlu0 %v590
        %v592 = vpop.xlane.xlu0 %591
        %v593 = vmax.f32 %v454, %v456
        %594 = vmax.xlane.f32.xlu0 %v593
        %v595 = vpop.xlane.xlu0 %594
        %v596 = vmax.f32 %v460, %v462
        %597 = vmax.xlane.f32.xlu0 %v596
        %v598 = vpop.xlane.xlu0 %597
        %v599 = vmax.f32 %v466, %v468
        %600 = vmax.xlane.f32.xlu0 %v599
        %v601 = vpop.xlane.xlu0 %600
        %v602 = vmax.f32 %v472, %v474
        %603 = vmax.xlane.f32.xlu0 %v602
        %v604 = vpop.xlane.xlu0 %603
        %v605 = vmax.f32 %v478, %v480
        %606 = vmax.xlane.f32.xlu0 %v605
        %v607 = vpop.xlane.xlu0 %606
        %v608 = vmax.f32 %v484, %v486
        %609 = vmax.xlane.f32.xlu0 %v608
        %v610 = vpop.xlane.xlu0 %609
        %v611 = vmax.f32 %v490, %v492
        %612 = vmax.xlane.f32.xlu0 %v611
        %v613 = vpop.xlane.xlu0 %612
        %v614 = vmax.f32 %v496, %v498
        %615 = vmax.xlane.f32.xlu0 %v614
        %v616 = vpop.xlane.xlu0 %615
        %v617 = vmax.f32 %v502, %v504
        %618 = vmax.xlane.f32.xlu0 %v617
        %v619 = vpop.xlane.xlu0 %618
        %v620 = vmax.f32 %v508, %v510
        %621 = vmax.xlane.f32.xlu0 %v620
        %v622 = vpop.xlane.xlu0 %621
        %v623 = vmax.f32 %v514, %v516
        %624 = vmax.xlane.f32.xlu0 %v623
        %v625 = vpop.xlane.xlu0 %624
        %v626 = vmax.f32 %v520, %v522
        %627 = vmax.xlane.f32.xlu0 %v626
        %v628 = vpop.xlane.xlu0 %627
        %v629 = vmax.f32 %v526, %v528
        %630 = vmax.xlane.f32.xlu0 %v629
        %v631 = vpop.xlane.xlu0 %630
        %v632 = vmax.f32 %v532, %v534
        %633 = vmax.xlane.f32.xlu0 %v632
        %v634 = vpop.xlane.xlu0 %633
        %v635 = vmax.f32 %v538, %v540
        %636 = vmax.xlane.f32.xlu0 %v635
        %v637 = vpop.xlane.xlu0 %636
        %v638 = vsub.f32 1.0, %v544
        %v639 = vsub.f32 1.0, %v547
        %v640 = vsub.f32 1.0, %v550
        %v641 = vsub.f32 1.0, %v553
        %v642 = vsub.f32 1.0, %v556
        %v643 = vsub.f32 1.0, %v559
        %v644 = vsub.f32 1.0, %v562
        %v645 = vsub.f32 1.0, %v565
        %v646 = vsub.f32 1.0, %v568
        %v647 = vsub.f32 1.0, %v571
        %v648 = vsub.f32 1.0, %v574
        %v649 = vsub.f32 1.0, %v577
        %v650 = vsub.f32 1.0, %v580
        %v651 = vsub.f32 1.0, %v583
        %v652 = vsub.f32 1.0, %v586
        %v653 = vsub.f32 1.0, %v589
        %v654 = vsub.f32 1.0, %v592
        %v655 = vsub.f32 1.0, %v595
        %v656 = vsub.f32 1.0, %v598
        %v657 = vsub.f32 1.0, %v601
        %v658 = vsub.f32 1.0, %v604
        %v659 = vsub.f32 1.0, %v607
        %v660 = vsub.f32 1.0, %v610
        %v661 = vsub.f32 1.0, %v613
        %v662 = vsub.f32 1.0, %v616
        %v663 = vsub.f32 1.0, %v619
        %v664 = vsub.f32 1.0, %v622
        %v665 = vsub.f32 1.0, %v625
        %v666 = vsub.f32 1.0, %v628
        %v667 = vsub.f32 1.0, %v631
        %v668 = vsub.f32 1.0, %v634
        %v669 = vsub.f32 1.0, %v637
        %v670 = vadd.f32 %v638, 1e-05
        %v671 = vadd.f32 %v639, 1e-05
        %v672 = vadd.f32 %v640, 1e-05
        %v673 = vadd.f32 %v641, 1e-05
        %v674 = vadd.f32 %v642, 1e-05
        %v675 = vadd.f32 %v643, 1e-05
        %v676 = vadd.f32 %v644, 1e-05
        %v677 = vadd.f32 %v645, 1e-05
        %v678 = vadd.f32 %v646, 1e-05
        %v679 = vadd.f32 %v647, 1e-05
        %v680 = vadd.f32 %v648, 1e-05
        %v681 = vadd.f32 %v649, 1e-05
        %v682 = vadd.f32 %v650, 1e-05
        %v683 = vadd.f32 %v651, 1e-05
        %v684 = vadd.f32 %v652, 1e-05
        %v685 = vadd.f32 %v653, 1e-05
        %v686 = vadd.f32 %v654, 1e-05
        %v687 = vadd.f32 %v655, 1e-05
        %v688 = vadd.f32 %v656, 1e-05
        %v689 = vadd.f32 %v657, 1e-05
        %v690 = vadd.f32 %v658, 1e-05
        %v691 = vadd.f32 %v659, 1e-05
        %v692 = vadd.f32 %v660, 1e-05
        %v693 = vadd.f32 %v661, 1e-05
        %v694 = vadd.f32 %v662, 1e-05
        %v695 = vadd.f32 %v663, 1e-05
        %v696 = vadd.f32 %v664, 1e-05
        %v697 = vadd.f32 %v665, 1e-05
        %v698 = vadd.f32 %v666, 1e-05
        %v699 = vadd.f32 %v667, 1e-05
        %v700 = vadd.f32 %v668, 1e-05
        %v701 = vadd.f32 %v669, 1e-05
        %v702 = vsub.f32 %v670, 1.0
        %v703 = vsub.f32 %v671, 1.0
        %v704 = vsub.f32 %v672, 1.0
        %v705 = vsub.f32 %v673, 1.0
        %v706 = vsub.f32 %v674, 1.0
        %v707 = vsub.f32 %v675, 1.0
        %v708 = vsub.f32 %v676, 1.0
        %v709 = vsub.f32 %v677, 1.0
        %v710 = vsub.f32 %v678, 1.0
        %v711 = vsub.f32 %v679, 1.0
        %v712 = vsub.f32 %v680, 1.0
        %v713 = vsub.f32 %v681, 1.0
        %v714 = vsub.f32 %v682, 1.0
        %v715 = vsub.f32 %v683, 1.0
        %v716 = vsub.f32 %v684, 1.0
        %v717 = vsub.f32 %v685, 1.0
        %v718 = vsub.f32 %v686, 1.0
        %v719 = vsub.f32 %v687, 1.0
        %v720 = vsub.f32 %v688, 1.0
        %v721 = vsub.f32 %v689, 1.0
        %v722 = vsub.f32 %v690, 1.0
        %v723 = vsub.f32 %v691, 1.0
        %v724 = vsub.f32 %v692, 1.0
        %v725 = vsub.f32 %v693, 1.0
        %v726 = vsub.f32 %v694, 1.0
        %v727 = vsub.f32 %v695, 1.0
        %v728 = vsub.f32 %v696, 1.0
        %v729 = vsub.f32 %v697, 1.0
        %v730 = vsub.f32 %v698, 1.0
        %v731 = vsub.f32 %v699, 1.0
        %v732 = vsub.f32 %v700, 1.0
        %v733 = vsub.f32 %v701, 1.0
        %v734 = vmul.f32 %v670, 0.5
        %v735 = vmul.f32 %v671, 0.5
        %v736 = vmul.f32 %v672, 0.5
        %v737 = vmul.f32 %v673, 0.5
        %v738 = vmul.f32 %v674, 0.5
        %v739 = vmul.f32 %v675, 0.5
        %v740 = vmul.f32 %v676, 0.5
        %v741 = vmul.f32 %v677, 0.5
        %v742 = vmul.f32 %v678, 0.5
        %v743 = vmul.f32 %v679, 0.5
        %v744 = vmul.f32 %v680, 0.5
        %v745 = vmul.f32 %v681, 0.5
        %v746 = vmul.f32 %v682, 0.5
        %v747 = vmul.f32 %v683, 0.5
        %v748 = vmul.f32 %v684, 0.5
        %v749 = vmul.f32 %v685, 0.5
        %v750 = vmul.f32 %v686, 0.5
        %v751 = vmul.f32 %v687, 0.5
        %v752 = vmul.f32 %v688, 0.5
        %v753 = vmul.f32 %v689, 0.5
        %v754 = vmul.f32 %v690, 0.5
        %v755 = vmul.f32 %v691, 0.5
        %v756 = vmul.f32 %v692, 0.5
        %v757 = vmul.f32 %v693, 0.5
        %v758 = vmul.f32 %v694, 0.5
        %v759 = vmul.f32 %v695, 0.5
        %v760 = vmul.f32 %v696, 0.5
        %v761 = vmul.f32 %v697, 0.5
        %v762 = vmul.f32 %v698, 0.5
        %v763 = vmul.f32 %v699, 0.5
        %v764 = vmul.f32 %v700, 0.5
        %v765 = vmul.f32 %v701, 0.5
        %v766 = vrcp.pop %v734
        %v767 = vmul.f32 1.0, %v766
        %v768 = vrcp.pop %v735
        %v769 = vmul.f32 1.0, %v768
        %v770 = vrcp.pop %v736
        %v771 = vmul.f32 1.0, %v770
        %v772 = vrcp.pop %v737
        %v773 = vmul.f32 1.0, %v772
        %v774 = vrcp.pop %v738
        %v775 = vmul.f32 1.0, %v774
        %v776 = vrcp.pop %v739
        %v777 = vmul.f32 1.0, %v776
        %v778 = vrcp.pop %v740
        %v779 = vmul.f32 1.0, %v778
        %v780 = vrcp.pop %v741
        %v781 = vmul.f32 1.0, %v780
        %v782 = vrcp.pop %v742
        %v783 = vmul.f32 1.0, %v782
        %v784 = vrcp.pop %v743
        %v785 = vmul.f32 1.0, %v784
        %v786 = vrcp.pop %v744
        %v787 = vmul.f32 1.0, %v786
        %v788 = vrcp.pop %v745
        %v789 = vmul.f32 1.0, %v788
        %v790 = vrcp.pop %v746
        %v791 = vmul.f32 1.0, %v790
        %v792 = vrcp.pop %v747
        %v793 = vmul.f32 1.0, %v792
        %v794 = vrcp.pop %v748
        %v795 = vmul.f32 1.0, %v794
        %v796 = vrcp.pop %v749
        %v797 = vmul.f32 1.0, %v796
        %v798 = vrcp.pop %v750
        %v799 = vmul.f32 1.0, %v798
        %v800 = vrcp.pop %v751
        %v801 = vmul.f32 1.0, %v800
        %v802 = vrcp.pop %v752
        %v803 = vmul.f32 1.0, %v802
        %v804 = vrcp.pop %v753
        %v805 = vmul.f32 1.0, %v804
        %v806 = vrcp.pop %v754
        %v807 = vmul.f32 1.0, %v806
        %v808 = vrcp.pop %v755
        %v809 = vmul.f32 1.0, %v808
        %v810 = vrcp.pop %v756
        %v811 = vmul.f32 1.0, %v810
        %v812 = vrcp.pop %v757
        %v813 = vmul.f32 1.0, %v812
        %v814 = vrcp.pop %v758
        %v815 = vmul.f32 1.0, %v814
        %v816 = vrcp.pop %v759
        %v817 = vmul.f32 1.0, %v816
        %v818 = vrcp.pop %v760
        %v819 = vmul.f32 1.0, %v818
        %v820 = vrcp.pop %v761
        %v821 = vmul.f32 1.0, %v820
        %v822 = vrcp.pop %v762
        %v823 = vmul.f32 1.0, %v822
        %v824 = vrcp.pop %v763
        %v825 = vmul.f32 1.0, %v824
        %v826 = vrcp.pop %v764
        %v827 = vmul.f32 1.0, %v826
        %v828 = vrcp.pop %v765
        %v829 = vmul.f32 1.0, %v828
        %v830 = vadd.f32 %v352, %v702
        %v831 = vadd.f32 %v354, %v702
        %v832 = vadd.f32 %v358, %v703
        %v833 = vadd.f32 %v360, %v703
        %v834 = vadd.f32 %v364, %v704
        %v835 = vadd.f32 %v366, %v704
        %v836 = vadd.f32 %v370, %v705
        %v837 = vadd.f32 %v372, %v705
        %v838 = vadd.f32 %v376, %v706
        %v839 = vadd.f32 %v378, %v706
        %v840 = vadd.f32 %v382, %v707
        %v841 = vadd.f32 %v384, %v707
        %v842 = vadd.f32 %v388, %v708
        %v843 = vadd.f32 %v390, %v708
        %v844 = vadd.f32 %v394, %v709
        %v845 = vadd.f32 %v396, %v709
        %v846 = vadd.f32 %v400, %v710
        %v847 = vadd.f32 %v402, %v710
        %v848 = vadd.f32 %v406, %v711
        %v849 = vadd.f32 %v408, %v711
        %v850 = vadd.f32 %v412, %v712
        %v851 = vadd.f32 %v414, %v712
        %v852 = vadd.f32 %v418, %v713
        %v853 = vadd.f32 %v420, %v713
        %v854 = vadd.f32 %v424, %v714
        %v855 = vadd.f32 %v426, %v714
        %v856 = vadd.f32 %v430, %v715
        %v857 = vadd.f32 %v432, %v715
        %v858 = vadd.f32 %v436, %v716
        %v859 = vadd.f32 %v438, %v716
        %v860 = vadd.f32 %v442, %v717
        %v861 = vadd.f32 %v444, %v717
        %v862 = vadd.f32 %v448, %v718
        %v863 = vadd.f32 %v450, %v718
        %v864 = vadd.f32 %v454, %v719
        %v865 = vadd.f32 %v456, %v719
        %v866 = vadd.f32 %v460, %v720
        %v867 = vadd.f32 %v462, %v720
        %v868 = vadd.f32 %v466, %v721
        %v869 = vadd.f32 %v468, %v721
        %v870 = vadd.f32 %v472, %v722
        %v871 = vadd.f32 %v474, %v722
        %v872 = vadd.f32 %v478, %v723
        %v873 = vadd.f32 %v480, %v723
        %v874 = vadd.f32 %v484, %v724
        %v875 = vadd.f32 %v486, %v724
        %v876 = vadd.f32 %v490, %v725
        %v877 = vadd.f32 %v492, %v725
        %v878 = vadd.f32 %v496, %v726
        %v879 = vadd.f32 %v498, %v726
        %v880 = vadd.f32 %v502, %v727
        %v881 = vadd.f32 %v504, %v727
        %v882 = vadd.f32 %v508, %v728
        %v883 = vadd.f32 %v510, %v728
        %v884 = vadd.f32 %v514, %v729
        %v885 = vadd.f32 %v516, %v729
        %v886 = vadd.f32 %v520, %v730
        %v887 = vadd.f32 %v522, %v730
        %v888 = vadd.f32 %v526, %v731
        %v889 = vadd.f32 %v528, %v731
        %v890 = vadd.f32 %v532, %v732
        %v891 = vadd.f32 %v534, %v732
        %v892 = vadd.f32 %v538, %v733
        %v893 = vadd.f32 %v540, %v733
        %v894 = vmul.f32 %v830, %v767
        %v895 = vmul.f32 %v831, %v767
        %v896 = vmul.f32 %v832, %v769
        %v897 = vmul.f32 %v833, %v769
        %v898 = vmul.f32 %v834, %v771
        %v899 = vmul.f32 %v835, %v771
        %v900 = vmul.f32 %v836, %v773
        %v901 = vmul.f32 %v837, %v773
        %v902 = vmul.f32 %v838, %v775
        %v903 = vmul.f32 %v839, %v775
        %v904 = vmul.f32 %v840, %v777
        %v905 = vmul.f32 %v841, %v777
        %v906 = vmul.f32 %v842, %v779
        %v907 = vmul.f32 %v843, %v779
        %v908 = vmul.f32 %v844, %v781
        %v909 = vmul.f32 %v845, %v781
        %v910 = vmul.f32 %v846, %v783
        %v911 = vmul.f32 %v847, %v783
        %v912 = vmul.f32 %v848, %v785
        %v913 = vmul.f32 %v849, %v785
        %v914 = vmul.f32 %v850, %v787
        %v915 = vmul.f32 %v851, %v787
        %v916 = vmul.f32 %v852, %v789
        %v917 = vmul.f32 %v853, %v789
        %v918 = vmul.f32 %v854, %v791
        %v919 = vmul.f32 %v855, %v791
        %v920 = vmul.f32 %v856, %v793
        %v921 = vmul.f32 %v857, %v793
        %v922 = vmul.f32 %v858, %v795
        %v923 = vmul.f32 %v859, %v795
        %v924 = vmul.f32 %v860, %v797
        %v925 = vmul.f32 %v861, %v797
        %v926 = vmul.f32 %v862, %v799
        %v927 = vmul.f32 %v863, %v799
        %v928 = vmul.f32 %v864, %v801
        %v929 = vmul.f32 %v865, %v801
        %v930 = vmul.f32 %v866, %v803
        %v931 = vmul.f32 %v867, %v803
        %v932 = vmul.f32 %v868, %v805
        %v933 = vmul.f32 %v869, %v805
        %v934 = vmul.f32 %v870, %v807
        %v935 = vmul.f32 %v871, %v807
        %v936 = vmul.f32 %v872, %v809
        %v937 = vmul.f32 %v873, %v809
        %v938 = vmul.f32 %v874, %v811
        %v939 = vmul.f32 %v875, %v811
        %v940 = vmul.f32 %v876, %v813
        %v941 = vmul.f32 %v877, %v813
        %v942 = vmul.f32 %v878, %v815
        %v943 = vmul.f32 %v879, %v815
        %v944 = vmul.f32 %v880, %v817
        %v945 = vmul.f32 %v881, %v817
        %v946 = vmul.f32 %v882, %v819
        %v947 = vmul.f32 %v883, %v819
        %v948 = vmul.f32 %v884, %v821
        %v949 = vmul.f32 %v885, %v821
        %v950 = vmul.f32 %v886, %v823
        %v951 = vmul.f32 %v887, %v823
        %v952 = vmul.f32 %v888, %v825
        %v953 = vmul.f32 %v889, %v825
        %v954 = vmul.f32 %v890, %v827
        %v955 = vmul.f32 %v891, %v827
        %v956 = vmul.f32 %v892, %v829
        %v957 = vmul.f32 %v893, %v829
        %v958 = vmul.f32 %v894, 1.442695
        %v959 = vpow.pop %v958
        %v960 = vmul.f32 %v895, 1.442695
        %v961 = vpow.pop %v960
        %v962 = vmul.f32 %v896, 1.442695
        %v963 = vpow.pop %v962
        %v964 = vmul.f32 %v897, 1.442695
        %v965 = vpow.pop %v964
        %v966 = vmul.f32 %v898, 1.442695
        %v967 = vpow.pop %v966
        %v968 = vmul.f32 %v899, 1.442695
        %v969 = vpow.pop %v968
        %v970 = vmul.f32 %v900, 1.442695
        %v971 = vpow.pop %v970
        %v972 = vmul.f32 %v901, 1.442695
        %v973 = vpow.pop %v972
        %v974 = vmul.f32 %v902, 1.442695
        %v975 = vpow.pop %v974
        %v976 = vmul.f32 %v903, 1.442695
        %v977 = vpow.pop %v976
        %v978 = vmul.f32 %v904, 1.442695
        %v979 = vpow.pop %v978
        %v980 = vmul.f32 %v905, 1.442695
        %v981 = vpow.pop %v980
        %v982 = vmul.f32 %v906, 1.442695
        %v983 = vpow.pop %v982
        %v984 = vmul.f32 %v907, 1.442695
        %v985 = vpow.pop %v984
        %v986 = vmul.f32 %v908, 1.442695
        %v987 = vpow.pop %v986
        %v988 = vmul.f32 %v909, 1.442695
        %v989 = vpow.pop %v988
        %v990 = vmul.f32 %v910, 1.442695
        %v991 = vpow.pop %v990
        %v992 = vmul.f32 %v911, 1.442695
        %v993 = vpow.pop %v992
        %v994 = vmul.f32 %v912, 1.442695
        %v995 = vpow.pop %v994
        %v996 = vmul.f32 %v913, 1.442695
        %v997 = vpow.pop %v996
        %v998 = vmul.f32 %v914, 1.442695
        %v999 = vpow.pop %v998
        %v1000 = vmul.f32 %v915, 1.442695
        %v1001 = vpow.pop %v1000
        %v1002 = vmul.f32 %v916, 1.442695
        %v1003 = vpow.pop %v1002
        %v1004 = vmul.f32 %v917, 1.442695
        %v1005 = vpow.pop %v1004
        %v1006 = vmul.f32 %v918, 1.442695
        %v1007 = vpow.pop %v1006
        %v1008 = vmul.f32 %v919, 1.442695
        %v1009 = vpow.pop %v1008
        %v1010 = vmul.f32 %v920, 1.442695
        %v1011 = vpow.pop %v1010
        %v1012 = vmul.f32 %v921, 1.442695
        %v1013 = vpow.pop %v1012
        %v1014 = vmul.f32 %v922, 1.442695
        %v1015 = vpow.pop %v1014
        %v1016 = vmul.f32 %v923, 1.442695
        %v1017 = vpow.pop %v1016
        %v1018 = vmul.f32 %v924, 1.442695
        %v1019 = vpow.pop %v1018
        %v1020 = vmul.f32 %v925, 1.442695
        %v1021 = vpow.pop %v1020
        %v1022 = vmul.f32 %v926, 1.442695
        %v1023 = vpow.pop %v1022
        %v1024 = vmul.f32 %v927, 1.442695
        %v1025 = vpow.pop %v1024
        %v1026 = vmul.f32 %v928, 1.442695
        %v1027 = vpow.pop %v1026
        %v1028 = vmul.f32 %v929, 1.442695
        %v1029 = vpow.pop %v1028
        %v1030 = vmul.f32 %v930, 1.442695
        %v1031 = vpow.pop %v1030
        %v1032 = vmul.f32 %v931, 1.442695
        %v1033 = vpow.pop %v1032
        %v1034 = vmul.f32 %v932, 1.442695
        %v1035 = vpow.pop %v1034
        %v1036 = vmul.f32 %v933, 1.442695
        %v1037 = vpow.pop %v1036
        %v1038 = vmul.f32 %v934, 1.442695
        %v1039 = vpow.pop %v1038
        %v1040 = vmul.f32 %v935, 1.442695
        %v1041 = vpow.pop %v1040
        %v1042 = vmul.f32 %v936, 1.442695
        %v1043 = vpow.pop %v1042
        %v1044 = vmul.f32 %v937, 1.442695
        %v1045 = vpow.pop %v1044
        %v1046 = vmul.f32 %v938, 1.442695
        %v1047 = vpow.pop %v1046
        %v1048 = vmul.f32 %v939, 1.442695
        %v1049 = vpow.pop %v1048
        %v1050 = vmul.f32 %v940, 1.442695
        %v1051 = vpow.pop %v1050
        %v1052 = vmul.f32 %v941, 1.442695
        %v1053 = vpow.pop %v1052
        %v1054 = vmul.f32 %v942, 1.442695
        %v1055 = vpow.pop %v1054
        %v1056 = vmul.f32 %v943, 1.442695
        %v1057 = vpow.pop %v1056
        %v1058 = vmul.f32 %v944, 1.442695
        %v1059 = vpow.pop %v1058
        %v1060 = vmul.f32 %v945, 1.442695
        %v1061 = vpow.pop %v1060
        %v1062 = vmul.f32 %v946, 1.442695
        %v1063 = vpow.pop %v1062
        %v1064 = vmul.f32 %v947, 1.442695
        %v1065 = vpow.pop %v1064
        %v1066 = vmul.f32 %v948, 1.442695
        %v1067 = vpow.pop %v1066
        %v1068 = vmul.f32 %v949, 1.442695
        %v1069 = vpow.pop %v1068
        %v1070 = vmul.f32 %v950, 1.442695
        %v1071 = vpow.pop %v1070
        %v1072 = vmul.f32 %v951, 1.442695
        %v1073 = vpow.pop %v1072
        %v1074 = vmul.f32 %v952, 1.442695
        %v1075 = vpow.pop %v1074
        %v1076 = vmul.f32 %v953, 1.442695
        %v1077 = vpow.pop %v1076
        %v1078 = vmul.f32 %v954, 1.442695
        %v1079 = vpow.pop %v1078
        %v1080 = vmul.f32 %v955, 1.442695
        %v1081 = vpow.pop %v1080
        %v1082 = vmul.f32 %v956, 1.442695
        %v1083 = vpow.pop %v1082
        %v1084 = vmul.f32 %v957, 1.442695
        %v1085 = vpow.pop %v1084
        %v1086 = vadd.f32 %v959, %v961
        %1087 = vadd.xlane.f32.xlu0 %v1086
        %v1088 = vpop.xlane.xlu0 %1087
        %v1089 = vadd.f32 %v963, %v965
        %1090 = vadd.xlane.f32.xlu0 %v1089
        %v1091 = vpop.xlane.xlu0 %1090
        %v1092 = vadd.f32 %v967, %v969
        %1093 = vadd.xlane.f32.xlu0 %v1092
        %v1094 = vpop.xlane.xlu0 %1093
        %v1095 = vadd.f32 %v971, %v973
        %1096 = vadd.xlane.f32.xlu0 %v1095
        %v1097 = vpop.xlane.xlu0 %1096
        %v1098 = vadd.f32 %v975, %v977
        %1099 = vadd.xlane.f32.xlu0 %v1098
        %v1100 = vpop.xlane.xlu0 %1099
        %v1101 = vadd.f32 %v979, %v981
        %1102 = vadd.xlane.f32.xlu0 %v1101
        %v1103 = vpop.xlane.xlu0 %1102
        %v1104 = vadd.f32 %v983, %v985
        %1105 = vadd.xlane.f32.xlu0 %v1104
        %v1106 = vpop.xlane.xlu0 %1105
        %v1107 = vadd.f32 %v987, %v989
        %1108 = vadd.xlane.f32.xlu0 %v1107
        %v1109 = vpop.xlane.xlu0 %1108
        %v1110 = vadd.f32 %v991, %v993
        %1111 = vadd.xlane.f32.xlu0 %v1110
        %v1112 = vpop.xlane.xlu0 %1111
        %v1113 = vadd.f32 %v995, %v997
        %1114 = vadd.xlane.f32.xlu0 %v1113
        %v1115 = vpop.xlane.xlu0 %1114
        %v1116 = vadd.f32 %v999, %v1001
        %1117 = vadd.xlane.f32.xlu0 %v1116
        %v1118 = vpop.xlane.xlu0 %1117
        %v1119 = vadd.f32 %v1003, %v1005
        %1120 = vadd.xlane.f32.xlu0 %v1119
        %v1121 = vpop.xlane.xlu0 %1120
        %v1122 = vadd.f32 %v1007, %v1009
        %1123 = vadd.xlane.f32.xlu0 %v1122
        %v1124 = vpop.xlane.xlu0 %1123
        %v1125 = vadd.f32 %v1011, %v1013
        %1126 = vadd.xlane.f32.xlu0 %v1125
        %v1127 = vpop.xlane.xlu0 %1126
        %v1128 = vadd.f32 %v1015, %v1017
        %1129 = vadd.xlane.f32.xlu0 %v1128
        %v1130 = vpop.xlane.xlu0 %1129
        %v1131 = vadd.f32 %v1019, %v1021
        %1132 = vadd.xlane.f32.xlu0 %v1131
        %v1133 = vpop.xlane.xlu0 %1132
        %v1134 = vadd.f32 %v1023, %v1025
        %1135 = vadd.xlane.f32.xlu0 %v1134
        %v1136 = vpop.xlane.xlu0 %1135
        %v1137 = vadd.f32 %v1027, %v1029
        %1138 = vadd.xlane.f32.xlu0 %v1137
        %v1139 = vpop.xlane.xlu0 %1138
        %v1140 = vadd.f32 %v1031, %v1033
        %1141 = vadd.xlane.f32.xlu0 %v1140
        %v1142 = vpop.xlane.xlu0 %1141
        %v1143 = vadd.f32 %v1035, %v1037
        %1144 = vadd.xlane.f32.xlu0 %v1143
        %v1145 = vpop.xlane.xlu0 %1144
        %v1146 = vadd.f32 %v1039, %v1041
        %1147 = vadd.xlane.f32.xlu0 %v1146
        %v1148 = vpop.xlane.xlu0 %1147
        %v1149 = vadd.f32 %v1043, %v1045
        %1150 = vadd.xlane.f32.xlu0 %v1149
        %v1151 = vpop.xlane.xlu0 %1150
        %v1152 = vadd.f32 %v1047, %v1049
        %1153 = vadd.xlane.f32.xlu0 %v1152
        %v1154 = vpop.xlane.xlu0 %1153
        %v1155 = vadd.f32 %v1051, %v1053
        %1156 = vadd.xlane.f32.xlu0 %v1155
        %v1157 = vpop.xlane.xlu0 %1156
        %v1158 = vadd.f32 %v1055, %v1057
        %1159 = vadd.xlane.f32.xlu0 %v1158
        %v1160 = vpop.xlane.xlu0 %1159
        %v1161 = vadd.f32 %v1059, %v1061
        %1162 = vadd.xlane.f32.xlu0 %v1161
        %v1163 = vpop.xlane.xlu0 %1162
        %v1164 = vadd.f32 %v1063, %v1065
        %1165 = vadd.xlane.f32.xlu0 %v1164
        %v1166 = vpop.xlane.xlu0 %1165
        %v1167 = vadd.f32 %v1067, %v1069
        %1168 = vadd.xlane.f32.xlu0 %v1167
        %v1169 = vpop.xlane.xlu0 %1168
        %v1170 = vadd.f32 %v1071, %v1073
        %1171 = vadd.xlane.f32.xlu0 %v1170
        %v1172 = vpop.xlane.xlu0 %1171
        %v1173 = vadd.f32 %v1075, %v1077
        %1174 = vadd.xlane.f32.xlu0 %v1173
        %v1175 = vpop.xlane.xlu0 %1174
        %v1176 = vadd.f32 %v1079, %v1081
        %1177 = vadd.xlane.f32.xlu0 %v1176
        %v1178 = vpop.xlane.xlu0 %1177
        %v1179 = vadd.f32 %v1083, %v1085
        %1180 = vadd.xlane.f32.xlu0 %v1179
        %v1181 = vpop.xlane.xlu0 %1180
        %v1182 = vrcp.pop %v1088
        %v1183 = vmul.f32 1.0, %v1182
        %v1184 = vrcp.pop %v1091
        %v1185 = vmul.f32 1.0, %v1184
        %v1186 = vrcp.pop %v1094
        %v1187 = vmul.f32 1.0, %v1186
        %v1188 = vrcp.pop %v1097
        %v1189 = vmul.f32 1.0, %v1188
        %v1190 = vrcp.pop %v1100
        %v1191 = vmul.f32 1.0, %v1190
        %v1192 = vrcp.pop %v1103
        %v1193 = vmul.f32 1.0, %v1192
        %v1194 = vrcp.pop %v1106
        %v1195 = vmul.f32 1.0, %v1194
        %v1196 = vrcp.pop %v1109
        %v1197 = vmul.f32 1.0, %v1196
        %v1198 = vrcp.pop %v1112
        %v1199 = vmul.f32 1.0, %v1198
        %v1200 = vrcp.pop %v1115
        %v1201 = vmul.f32 1.0, %v1200
        %v1202 = vrcp.pop %v1118
        %v1203 = vmul.f32 1.0, %v1202
        %v1204 = vrcp.pop %v1121
        %v1205 = vmul.f32 1.0, %v1204
        %v1206 = vrcp.pop %v1124
        %v1207 = vmul.f32 1.0, %v1206
        %v1208 = vrcp.pop %v1127
        %v1209 = vmul.f32 1.0, %v1208
        %v1210 = vrcp.pop %v1130
        %v1211 = vmul.f32 1.0, %v1210
        %v1212 = vrcp.pop %v1133
        %v1213 = vmul.f32 1.0, %v1212
        %v1214 = vrcp.pop %v1136
        %v1215 = vmul.f32 1.0, %v1214
        %v1216 = vrcp.pop %v1139
        %v1217 = vmul.f32 1.0, %v1216
        %v1218 = vrcp.pop %v1142
        %v1219 = vmul.f32 1.0, %v1218
        %v1220 = vrcp.pop %v1145
        %v1221 = vmul.f32 1.0, %v1220
        %v1222 = vrcp.pop %v1148
        %v1223 = vmul.f32 1.0, %v1222
        %v1224 = vrcp.pop %v1151
        %v1225 = vmul.f32 1.0, %v1224
        %v1226 = vrcp.pop %v1154
        %v1227 = vmul.f32 1.0, %v1226
        %v1228 = vrcp.pop %v1157
        %v1229 = vmul.f32 1.0, %v1228
        %v1230 = vrcp.pop %v1160
        %v1231 = vmul.f32 1.0, %v1230
        %v1232 = vrcp.pop %v1163
        %v1233 = vmul.f32 1.0, %v1232
        %v1234 = vrcp.pop %v1166
        %v1235 = vmul.f32 1.0, %v1234
        %v1236 = vrcp.pop %v1169
        %v1237 = vmul.f32 1.0, %v1236
        %v1238 = vrcp.pop %v1172
        %v1239 = vmul.f32 1.0, %v1238
        %v1240 = vrcp.pop %v1175
        %v1241 = vmul.f32 1.0, %v1240
        %v1242 = vrcp.pop %v1178
        %v1243 = vmul.f32 1.0, %v1242
        %v1244 = vrcp.pop %v1181
        %v1245 = vmul.f32 1.0, %v1244
        %v1246 = vmul.f32 %v959, %v1183
        %v1247 = vmul.f32 %v961, %v1183
        %v1248 = vmul.f32 %v963, %v1185
        %v1249 = vmul.f32 %v965, %v1185
        %v1250 = vmul.f32 %v967, %v1187
        %v1251 = vmul.f32 %v969, %v1187
        %v1252 = vmul.f32 %v971, %v1189
        %v1253 = vmul.f32 %v973, %v1189
        %v1254 = vmul.f32 %v975, %v1191
        %v1255 = vmul.f32 %v977, %v1191
        %v1256 = vmul.f32 %v979, %v1193
        %v1257 = vmul.f32 %v981, %v1193
        %v1258 = vmul.f32 %v983, %v1195
        %v1259 = vmul.f32 %v985, %v1195
        %v1260 = vmul.f32 %v987, %v1197
        %v1261 = vmul.f32 %v989, %v1197
        %v1262 = vmul.f32 %v991, %v1199
        %v1263 = vmul.f32 %v993, %v1199
        %v1264 = vmul.f32 %v995, %v1201
        %v1265 = vmul.f32 %v997, %v1201
        %v1266 = vmul.f32 %v999, %v1203
        %v1267 = vmul.f32 %v1001, %v1203
        %v1268 = vmul.f32 %v1003, %v1205
        %v1269 = vmul.f32 %v1005, %v1205
        %v1270 = vmul.f32 %v1007, %v1207
        %v1271 = vmul.f32 %v1009, %v1207
        %v1272 = vmul.f32 %v1011, %v1209
        %v1273 = vmul.f32 %v1013, %v1209
        %v1274 = vmul.f32 %v1015, %v1211
        %v1275 = vmul.f32 %v1017, %v1211
        %v1276 = vmul.f32 %v1019, %v1213
        %v1277 = vmul.f32 %v1021, %v1213
        %v1278 = vmul.f32 %v1023, %v1215
        %v1279 = vmul.f32 %v1025, %v1215
        %v1280 = vmul.f32 %v1027, %v1217
        %v1281 = vmul.f32 %v1029, %v1217
        %v1282 = vmul.f32 %v1031, %v1219
        %v1283 = vmul.f32 %v1033, %v1219
        %v1284 = vmul.f32 %v1035, %v1221
        %v1285 = vmul.f32 %v1037, %v1221
        %v1286 = vmul.f32 %v1039, %v1223
        %v1287 = vmul.f32 %v1041, %v1223
        %v1288 = vmul.f32 %v1043, %v1225
        %v1289 = vmul.f32 %v1045, %v1225
        %v1290 = vmul.f32 %v1047, %v1227
        %v1291 = vmul.f32 %v1049, %v1227
        %v1292 = vmul.f32 %v1051, %v1229
        %v1293 = vmul.f32 %v1053, %v1229
        %v1294 = vmul.f32 %v1055, %v1231
        %v1295 = vmul.f32 %v1057, %v1231
        %v1296 = vmul.f32 %v1059, %v1233
        %v1297 = vmul.f32 %v1061, %v1233
        %v1298 = vmul.f32 %v1063, %v1235
        %v1299 = vmul.f32 %v1065, %v1235
        %v1300 = vmul.f32 %v1067, %v1237
        %v1301 = vmul.f32 %v1069, %v1237
        %v1302 = vmul.f32 %v1071, %v1239
        %v1303 = vmul.f32 %v1073, %v1239
        %v1304 = vmul.f32 %v1075, %v1241
        %v1305 = vmul.f32 %v1077, %v1241
        %v1306 = vmul.f32 %v1079, %v1243
        %v1307 = vmul.f32 %v1081, %v1243
        %v1308 = vmul.f32 %v1083, %v1245
        %v1309 = vmul.f32 %v1085, %v1245
        %v1310 = vmax.f32 %v1246, %v1250
        %v1311 = vmax.f32 %v1248, %v1252
        %v1312 = vmax.f32 %v1310, %v1254
        %v1313 = vmax.f32 %v1311, %v1256
        %v1314 = vmax.f32 %v1312, %v1258
        %v1315 = vmax.f32 %v1313, %v1260
        %v1316 = vmax.f32 %v1314, %v1262
        %v1317 = vmax.f32 %v1315, %v1264
        %v1318 = vmax.f32 %v1316, %v1266
        %v1319 = vmax.f32 %v1317, %v1268
        %v1320 = vmax.f32 %v1318, %v1270
        %v1321 = vmax.f32 %v1319, %v1272
        %v1322 = vmax.f32 %v1320, %v1274
        %v1323 = vmax.f32 %v1321, %v1276
        %v1324 = vmax.f32 %v1322, %v1278
        %v1325 = vmax.f32 %v1323, %v1280
        %v1326 = vmax.f32 %v1324, %v1282
        %v1327 = vmax.f32 %v1325, %v1284
        %v1328 = vmax.f32 %v1326, %v1286
        %v1329 = vmax.f32 %v1327, %v1288
        %v1330 = vmax.f32 %v1328, %v1290
        %v1331 = vmax.f32 %v1329, %v1292
        %v1332 = vmax.f32 %v1330, %v1294
        %v1333 = vmax.f32 %v1331, %v1296
        %v1334 = vmax.f32 %v1332, %v1298
        %v1335 = vmax.f32 %v1333, %v1300
        %v1336 = vmax.f32 %v1334, %v1302
        %v1337 = vmax.f32 %v1335, %v1304
        %v1338 = vmax.f32 %v1336, %v1306
        %v1339 = vmax.f32 %v1337, %v1308
        %v1340 = vmax.f32 %v1338, %v1339
        %v1341 = vrot.slane %v1340, 4
        %v1342 = vmax.f32 %v1340, %v1341
        %v1343 = vrot.slane %v1342, 2
        %v1344 = vmax.f32 %v1342, %v1343
        %v1345 = vrot.slane %v1344, 1
        %v1346 = vmax.f32 %v1344, %v1345
        %v1347 = vmax.f32 %v1247, %v1251
        %v1348 = vmax.f32 %v1249, %v1253
        %v1349 = vmax.f32 %v1347, %v1255
        %v1350 = vmax.f32 %v1348, %v1257
        %v1351 = vmax.f32 %v1349, %v1259
        %v1352 = vmax.f32 %v1350, %v1261
        %v1353 = vmax.f32 %v1351, %v1263
        %v1354 = vmax.f32 %v1352, %v1265
        %v1355 = vmax.f32 %v1353, %v1267
        %v1356 = vmax.f32 %v1354, %v1269
        %v1357 = vmax.f32 %v1355, %v1271
        %v1358 = vmax.f32 %v1356, %v1273
        %v1359 = vmax.f32 %v1357, %v1275
        %v1360 = vmax.f32 %v1358, %v1277
        %v1361 = vmax.f32 %v1359, %v1279
        %v1362 = vmax.f32 %v1360, %v1281
        %v1363 = vmax.f32 %v1361, %v1283
        %v1364 = vmax.f32 %v1362, %v1285
        %v1365 = vmax.f32 %v1363, %v1287
        %v1366 = vmax.f32 %v1364, %v1289
        %v1367 = vmax.f32 %v1365, %v1291
        %v1368 = vmax.f32 %v1366, %v1293
        %v1369 = vmax.f32 %v1367, %v1295
        %v1370 = vmax.f32 %v1368, %v1297
        %v1371 = vmax.f32 %v1369, %v1299
        %v1372 = vmax.f32 %v1370, %v1301
        %v1373 = vmax.f32 %v1371, %v1303
        %v1374 = vmax.f32 %v1372, %v1305
        %v1375 = vmax.f32 %v1373, %v1307
        %v1376 = vmax.f32 %v1374, %v1309
        %v1377 = vmax.f32 %v1375, %v1376
        %v1378 = vrot.slane %v1377, 4
        %v1379 = vmax.f32 %v1377, %v1378
        %v1380 = vrot.slane %v1379, 2
        %v1381 = vmax.f32 %v1379, %v1380
        %v1382 = vrot.slane %v1381, 1
        %v1383 = vmax.f32 %v1381, %v1382
        %v1386 = vcombine.low %v1346, %v1383
        %v1388 = vunpack.c.l.s4 1966171168
        %v1389 = vunpack.c.0.s8 %v1388
        %v1390 = vlaneseq
        %v1391 = vshrl.u32 %v1390, 7
        %v1392 = vsub.s32 %v1389, %v1391
        %v1393 = vrot.slane %v1386, %v1392
        %v1395 = vunpack.c.l.s4 1966171168
        %v1396 = vunpack.c.0.s8 %v1395
        %v1397 = vlaneseq
        %v1398 = vshrl.u32 %v1397, 7
        %v1399 = vsub.s32 %v1396, %v1398
        %v1400 = vrot.slane %v1393, %v1399
        %v1402 = vlaneseq
        %vm1403 = vcmp.ge.s32.totalorder %v1402, 0
        %vm1404 = vcmp.lt.s32.totalorder %v1402, 256
        %vm1405 = vmand %vm1403, %vm1404
        %1406 = vst.msk [vmem:[%s219] sm:$0x3] %vm1405, %v1400
        %s1407 = sand.u32 %s98, 1
        %s1408 = scalar_lea.sflag [#allocation4], %s1407
        %s1409 = sand.u32 %s98, 1
        %s1410 = smul.addr %s1409, 2
        %s1411 = scalar_lea.vmem [#allocation7], %s1410
        // Predicated region
        $region37: #{tpu_custom_call.1} parent=27 // pred_check
          %p1412 = pneg %p108
        $region38: #{tpu_custom_call.1} parent=27 // pred_check_branch
          %1414 = sbr.rel (%p1412) target = $region40
        $region39: #{tpu_custom_call.1} parent=27 // pred_region
          %s1416 = ssub.s32 32, 32
          %1417 = vsyncadd %s1408, %s1416
          %s1418 = smul.addr %s27, 2
          %s1419 = smul.addr %s26, 2
          %s1420 = sadd.s32 %s1418, %s1419
          %s1421 = smul.addr %s1420, 16
          %s1422 = scalar_lea.hbm %s2, %s1421
          %s1424 = sshll.u32 %s1411, 4
          %s1425 = int_to_ptr.vmem [resolvable:$true] %s1424
          %1427 = dma.vmem_to_hbm [thread:$0]  %s1425, 32, %s1422, %s1408
        $region40: #{tpu_custom_call.1} parent=27 // pred_fallthru
          _
      $region28: #{tpu_custom_call.1} parent=5 // pred_fallthru
        _
      %p1428 = scmp.le.s32.totalorder 2, %s17
      // Predicated region
      $region41: #{tpu_custom_call.1} parent=5 // pred_check
        %p1429 = pneg %p1428
      $region42: #{tpu_custom_call.1} parent=5 // pred_check_branch
        %1431 = sbr.rel (%p1429) target = $region44
      $region43: #{tpu_custom_call.1} parent=5 // pred_region
        %s1432 = ssub.s32 %s17, 2
        // Predicated region
        $region45: #{tpu_custom_call.1} parent=43 // pred_check
          %p1433 = pneg %p114
        $region46: #{tpu_custom_call.1} parent=43 // pred_check_branch
          %1435 = sbr.rel (%p1433) target = $region48
        $region47: #{tpu_custom_call.1} parent=43 // pred_region
          %s1436 = sand.u32 %s99, 1
          %s1437 = scalar_lea.sflag [#allocation4], %s1436
          %s1438 = sand.u32 %s99, 1
          %s1439 = smul.addr %s1438, 2
          %s1440 = scalar_lea.vmem [#allocation7], %s1439
          %1441 = dma.done %s1437, 32
        $region48: #{tpu_custom_call.1} parent=43 // pred_fallthru
          _
      $region44: #{tpu_custom_call.1} parent=5 // pred_fallthru
        _
    $region6: #{tpu_custom_call.1} parent=1 // loop_footer
      %s21 = sadd.s32 1, %s17
    $region7: #{tpu_custom_call.1} parent=1 // loop_footer_branch
      %16 = sbr.rel target = $region3
    $region8: #{tpu_custom_call.1} parent=1 // loop_exit
      _
    %1442 = vsyncpa [#allocation3], 1
    %s1443 = scalar_lea.sflag [#allocation3], 1
    %1444 = vsyncpa %s1443, 1
    %1445 = vsyncpa [#allocation6], 1
    %s1446 = scalar_lea.sflag [#allocation6], 1
    %1447 = vsyncpa %s1446, 1
    %1448 = vsyncpa [#allocation4], 1
    %s1449 = scalar_lea.sflag [#allocation4], 1
    %1450 = vsyncpa %s1449, 1

</llo_original>
